<compile_context>
chip_gen: v7x
topology: tpu7x:2x2x1
jax: 0.10.0
libtpu: 0.0.40
codegen_flags: <defaults>
</compile_context>

<pallas_src>
import functools

import jax
import jax.numpy as jnp
from jax.experimental import pallas as pl
from jax.experimental.pallas import tpu as pltpu


# ----------------------------------------------------------------------------
# Fused, batched forward kernel (one grid step = G graphs)
# ----------------------------------------------------------------------------
def _dmpnn_fused_kernel(
    # per-block tensors
    af_ref,       # (G*N, Fa)    atom features of the G graphs in this block
    mask_ref,     # (G, G*N)     block-diagonal ligand (p_or_l == 0) readout mask
    eft_ref,      # (Fe, G*E)    edge features, transposed (lane-dense)
    coordt_ref,   # (3, G*N)     atom coordinates, transposed (lane-dense)
    src_ref,      # (1, 1, G*E)  block-local source-node index per edge
    dst_ref,      # (1, 1, G*E)  block-local destination-node index per edge
    aw_ref,       # (G, E)       attention_weight per edge
    # weights (constant index_map -> VMEM-resident across grid steps)
    atomw_ref, atomb_ref,        # lin_atom1
    edgewt_ref, edgebt_ref,      # lin_edge1 (stored transposed)
    f1w_ref, f1b_ref, f2w_ref, f2b_ref, f3w_ref, f3b_ref, f4w_ref, f4b_ref,
    # outputs
    packed_ref,   # (G, PACK)    per-graph row: [zk | dist_decay(E) | 0-pad]
    dist_ref,     # (1, 1, G*E)  per-edge distance (lane-dense)
    edgeht_ref,   # (H2, G*E)    lin_edge1 output, transposed (lane-dense)
):
    f32 = jnp.float32
    G, E = aw_ref.shape
    GN = coordt_ref.shape[1]
    GE = src_ref.shape[2]
    PACK = packed_ref.shape[1]

    # --- lin_atom1: ReLU(atom_feature @ W + b); M = G*N rows fills the MXU ---
    atom_h = jnp.dot(af_ref[...], atomw_ref[...], preferred_element_type=f32)
    atom_h = jnp.maximum(atom_h + atomb_ref[...], 0.0)               # (G*N, H)

    # --- lin_edge1 in transposed orientation -> lane-dense (H2, G*E) store ---
    edge_ht = jnp.dot(edgewt_ref[...], eft_ref[...], preferred_element_type=f32)
    edge_ht = jnp.maximum(edge_ht + edgebt_ref[...], 0.0)            # (H2, G*E)
    edgeht_ref[...] = edge_ht.astype(edgeht_ref.dtype)

    # --- distance('atom_coordinate') via a transposed signed one-hot gather --
    # sel_T[n, ge] = [n == src[ge]] - [n == dst[ge]]: sublane-iota compare
    # against lane-dense (1, GE) indices (sublane broadcast, no lane permutes).
    # NOTE(v7x): the dense (GN, GE) selection matrix is 4*GN*GE bytes; for
    # large graphs switch to a scalar-prefetch / pl.ds row gather or tile the
    # edge axis before approaching v7x's 64 MiB VMEM.
    node_iota = jax.lax.broadcasted_iota(jnp.int32, (GN, GE), 0)
    sel_t = ((node_iota == src_ref[0]).astype(f32)
             - (node_iota == dst_ref[0]).astype(f32))                # (GN, GE)
    diff_t = jnp.dot(coordt_ref[...], sel_t, preferred_element_type=f32)  # (3, GE)
    dx = diff_t[0:1, :]
    dy = diff_t[1:2, :]
    dz = diff_t[2:3, :]
    dist = jnp.sqrt(dx * dx + dy * dy + dz * dz)                     # (1, GE)
    dist_ref[0] = dist.astype(dist_ref.dtype)

    # --- dist_decay elementwise chain (f32; same where-semantics as torch) ---
    aw = aw_ref[...]                                                 # (G, E)
    diss = jnp.where(aw == 0.0, jnp.float32(-1.0), jnp.log(aw) * 2.0)
    decay = jnp.where(aw == 1.0, jnp.float32(1.0), diss)             # (G, E)

    # --- encoder --------------------------------------------------------------
    # TODO(synk): DMPNN_Encoder source not provided -> identity surrogate.
    h1 = atom_h

    # --- readout over ligand (p_or_l == 0) nodes: block-diag mask @ h on MXU --
    # TODO(synk): AttentiveFPReadout not provided -> masked-sum surrogate.
    hsg = jnp.dot(mask_ref[...], h1, preferred_element_type=f32)     # (G, H)

    # --- FNN: 3 x (Linear + ReLU) + Linear, G rows at a time ------------------
    z = jnp.maximum(jnp.dot(hsg, f1w_ref[...], preferred_element_type=f32)
                    + f1b_ref[...], 0.0)
    z = jnp.maximum(jnp.dot(z, f2w_ref[...], preferred_element_type=f32)
                    + f2b_ref[...], 0.0)
    z = jnp.maximum(jnp.dot(z, f3w_ref[...], preferred_element_type=f32)
                    + f3b_ref[...], 0.0)
    zk = jnp.dot(z, f4w_ref[...], preferred_element_type=f32) + f4b_ref[...]  # (G,1)

    # --- pack zk + dist_decay into ONE lane-dense (G, PACK) block ------------
    # Single HBM output buffer / single lane-dense writeback per block; the
    # per-slice assignments below are register->VMEM stores, not extra DMAs.
    packed_ref[...] = jnp.zeros((G, PACK), f32)
    packed_ref[:, 0:1] = zk.astype(packed_ref.dtype)
    packed_ref[:, 1:1 + E] = decay.astype(packed_ref.dtype)


# ----------------------------------------------------------------------------
# Wrapper: one pallas_call for a batch of B graphs
# ----------------------------------------------------------------------------
@functools.partial(jax.jit, static_argnames=("graphs_per_block",))
def dmpnn_forward(params, atom_feature, edge_feature, atom_coordinate,
                  src, dst, attention_weight, p_or_l, *, graphs_per_block=8):
    """Batched DMPNN forward (GCN_=0, degree_information=0).

    All B graphs share the same (padded) node count N and edge count E; the
    grid iterates over blocks of `graphs_per_block` graphs.  Returns
    (zk, att1, a1, aux) with zk:(B,1), att1:(B,E,1) dist_decay surrogate,
    a1:(B,N,1) ligand-mask surrogate, aux = {'dist':(B,E), 'edge_h':(B,E,H/2)}.
    """
    f32 = jnp.float32
    B, N, Fa = atom_feature.shape
    _, E, Fe = edge_feature.shape
    G = graphs_per_block
    assert B % G == 0, "batch size must be divisible by graphs_per_block"
    nb = B // G
    GN, GE = G * N, G * E

    H = params["atom_w"].shape[1]
    H2 = params["edge_w"].shape[1]
    PACK = max(128, -(-(1 + E) // 128) * 128)        # lane-dense packed width

    # ---- layout plumbing (cheap XLA reshapes / transposes, no compute) ------
    af2 = atom_feature.astype(f32).reshape(B * N, Fa)
    eft = edge_feature.astype(f32).reshape(B * E, Fe).T            # (Fe, B*E)
    coordt = atom_coordinate.astype(f32).reshape(B * N, 3).T       # (3, B*N)

    # block-local flattened node index: graph g of its block owns rows
    # [g*N, (g+1)*N) of the block's atom slab.
    blk_off = ((jnp.arange(B, dtype=jnp.int32) % G) * N)[:, None]  # (B, 1)
    src3 = (src.astype(jnp.int32) + blk_off).reshape(nb, 1, GE)
    dst3 = (dst.astype(jnp.int32) + blk_off).reshape(nb, 1, GE)

    aw2 = attention_weight.astype(f32)                             # (B, E)

    # block-diagonal ligand readout mask: row = graph, col = block-local node.
    lig = (p_or_l == 0).astype(f32)                                # (B, N)
    mask2d = (jnp.eye(G, dtype=f32)[None, :, :, None]
              * lig.reshape(nb, G, N)[:, None, :, :]).reshape(B, GN)

    edge_wt = params["edge_w"].astype(f32).T                       # (H2, Fe)
    edge_bt = params["edge_b"].astype(f32).reshape(H2, 1)          # (H2, 1)

    # TODO(synk): cast matmul operands to bf16 once the kernel is compute-bound
    # (kept f32 here to match the PyTorch module's numerics).
    inputs = [
        af2, mask2d, eft, coordt, src3, dst3, aw2,
        params["atom_w"].astype(f32), params["atom_b"].astype(f32),
        edge_wt, edge_bt,
        params["ffn1_w"].astype(f32), params["ffn1_b"].astype(f32),
        params["ffn2_w"].astype(f32), params["ffn2_b"].astype(f32),
        params["ffn3_w"].astype(f32), params["ffn3_b"].astype(f32),
        params["ffn4_w"].astype(f32), params["ffn4_b"].astype(f32),
    ]

    weight_spec = lambda w: pl.BlockSpec(w.shape, lambda b: (0, 0))
    in_specs = [
        pl.BlockSpec((GN, Fa), lambda b: (b, 0)),        # atom features
        pl.BlockSpec((G, GN), lambda b: (b, 0)),         # ligand readout mask
        pl.BlockSpec((Fe, GE), lambda b: (0, b)),        # edge features^T
        pl.BlockSpec((3, GN), lambda b: (0, b)),         # coordinates^T
        pl.BlockSpec((1, 1, GE), lambda b: (b, 0, 0)),   # src (block-local)
        pl.BlockSpec((1, 1, GE), lambda b: (b, 0, 0)),   # dst (block-local)
        pl.BlockSpec((G, E), lambda b: (b, 0)),          # attention weights
    ] + [weight_spec(w) for w in inputs[7:]]             # VMEM-resident weights

    out_shape = (
        jax.ShapeDtypeStruct((B, PACK), f32),            # [zk | dist_decay | 0]
        jax.ShapeDtypeStruct((nb, 1, GE), f32),          # edge distances
        jax.ShapeDtypeStruct((H2, B * E), f32),          # lin_edge1 output^T
    )
    out_specs = (
        pl.BlockSpec((G, PACK), lambda b: (b, 0)),
        pl.BlockSpec((1, 1, GE), lambda b: (b, 0, 0)),
        pl.BlockSpec((H2, GE), lambda b: (0, b)),
    )

    # Advisory cost estimate matching the work actually performed.
    flops = 2 * (B * N * Fa * H                        # lin_atom1
                 + B * E * Fe * H2                     # lin_edge1
                 + nb * 3 * GN * GE                    # one-hot coordinate gather
                 + nb * G * GN * H                     # ligand readout
                 + B * (H * (H // 2) + (H // 2) * (H // 4)
                        + (H // 4) * (H // 8) + (H // 8) * 1))
    out_elems = B * PACK + nb * GE + H2 * B * E
    bytes_accessed = 4 * (sum(int(x.size) for x in inputs) + out_elems)
    cost = pl.CostEstimate(flops=flops, transcendentals=2 * B * E,
                           bytes_accessed=bytes_accessed)

    packed, dist_blk, edge_ht = pl.pallas_call(
        _dmpnn_fused_kernel,
        out_shape=out_shape,
        grid=(nb,),
        in_specs=in_specs,
        out_specs=out_specs,
        compiler_params=pltpu.CompilerParams(
            dimension_semantics=("parallel",)),
        cost_estimate=cost,
    )(*inputs)

    zk = packed[:, 0:1]                                # (B, 1)
    att1 = packed[:, 1:1 + E].reshape(B, E, 1)         # dist_decay surrogate
    a1 = lig.reshape(B, N, 1)                          # readout-attention surrogate
    aux = {
        "dist": dist_blk.reshape(B, E),
        "edge_h": edge_ht.T.reshape(B, E, H2),
    }
    return zk, att1, a1, aux


# ----------------------------------------------------------------------------
# Pure-JAX reference of the same (surrogate) forward pass
# ----------------------------------------------------------------------------
def _reference_forward(params, atom_feature, edge_feature, atom_coordinate,
                       src, dst, attention_weight, p_or_l):
    f32 = jnp.float32
    atom_h = jax.nn.relu(atom_feature.astype(f32) @ params["atom_w"]
                         + params["atom_b"])                       # (B, N, H)
    edge_h = jax.nn.relu(edge_feature.astype(f32) @ params["edge_w"]
                         + params["edge_b"])                       # (B, E, H2)
    gather = jax.vmap(lambda c, i: c[i])
    diff = (gather(atom_coordinate.astype(f32), src)
            - gather(atom_coordinate.astype(f32), dst))            # (B, E, 3)
    dist = jnp.sqrt(jnp.sum(diff * diff, axis=-1))                 # (B, E)
    aw = attention_weight.astype(f32)
    diss = jnp.where(aw == 0.0, -1.0, jnp.log(aw) * 2.0)
    decay = jnp.where(aw == 1.0, 1.0, diss)                        # (B, E)
    h1 = atom_h                                                    # encoder identity
    lig = (p_or_l == 0).astype(f32)
    hsg = jnp.einsum("bn,bnh->bh", lig, h1)                        # (B, H)
    z = jax.nn.relu(hsg @ params["ffn1_w"] + params["ffn1_b"])
    z = jax.nn.relu(z @ params["ffn2_w"] + params["ffn2_b"])
    z = jax.nn.relu(z @ params["ffn3_w"] + params["ffn3_b"])
    zk = z @ params["ffn4_w"] + params["ffn4_b"]                   # (B, 1)
    return zk, decay, dist, edge_h


# ----------------------------------------------------------------------------
# Parameter construction (deterministic, synthetic)
# ----------------------------------------------------------------------------
def init_params(key, hidden_dim=32, in_dim_atom=70, in_dim_edge=14, output_dim=1):
    ks = jax.random.split(key, 12)
    p = {}

    def lin(kw, kb, fan_in, fan_out):
        w = jax.random.normal(kw, (fan_in, fan_out), jnp.float32) * 0.1
        b = jax.random.normal(kb, (1, fan_out), jnp.float32) * 0.1
        return w, b

    # DenseLayer lin_atom1 (ReLU) and lin_edge1 (ReLU)
    p["atom_w"], p["atom_b"] = lin(ks[0], ks[1], in_dim_atom, hidden_dim)
    p["edge_w"], p["edge_b"] = lin(ks[2], ks[3], in_dim_edge, hidden_dim // 2)

    # FNN: hidden -> h/2 -> h/4 -> h/8 -> output_dim
    d0, d1, d2, d3 = hidden_dim, hidden_dim // 2, hidden_dim // 4, hidden_dim // 8
    p["ffn1_w"], p["ffn1_b"] = lin(ks[4], ks[5], d0, d1)
    p["ffn2_w"], p["ffn2_b"] = lin(ks[6], ks[7], d1, d2)
    p["ffn3_w"], p["ffn3_b"] = lin(ks[8], ks[9], d2, d3)
    p["ffn4_w"], p["ffn4_b"] = lin(ks[10], ks[11], d3, output_dim)
    return p


# ----------------------------------------------------------------------------
if __name__ == "__main__":
    hidden_dim = 32
    in_dim_atom = 70
    in_dim_edge = 14
    B = 16     # batched graphs per call
    N = 16     # (padded) nodes per graph
    E = 32     # (padded) edges per graph

    key = jax.random.PRNGKey(0)
    k_par, k_af, k_ef, k_c, k_s, k_d, k_aw, k_pl = jax.random.split(key, 8)

    params = init_params(k_par, hidden_dim, in_dim_atom, in_dim_edge, 1)

    atom_feature = jax.random.normal(k_af, (B, N, in_dim_atom), jnp.float32)
    edge_feature = jax.random.normal(k_ef, (B, E, in_dim_edge), jnp.float32)
    atom_coordinate = jax.random.normal(k_c, (B, N, 3), jnp.float32)
    src = jax.random.randint(k_s, (B, E), 0, N)
    dst = jax.random.randint(k_d, (B, E), 0, N)

    # attention weights in [0,1] with exact 0s / 1s so both branches of the
    # dist_decay `where` chain are exercised.
    attention_weight = jax.random.uniform(k_aw, (B, E), jnp.float32)
    attention_weight = attention_weight.at[:, 0].set(0.0).at[:, 1].set(1.0)

    # protein-or-ligand flag (0 = ligand node, kept by the readout)
    p_or_l = (jax.random.uniform(k_pl, (B, N)) > 0.5).astype(jnp.int32)

    zk, att1, a1, aux = dmpnn_forward(params, atom_feature, edge_feature,
                                      atom_coordinate, src, dst,
                                      attention_weight, p_or_l,
                                      graphs_per_block=8)
    jax.block_until_ready((zk, att1, a1, aux))

    assert zk.shape == (B, 1)
    assert att1.shape == (B, E, 1)
    assert a1.shape == (B, N, 1)
    assert aux["dist"].shape == (B, E)
    assert aux["edge_h"].shape == (B, E, hidden_dim // 2)

    # pure-JAX reference check (matmul tolerance covers MXU pass differences)
    zk_r, decay_r, dist_r, edge_h_r = _reference_forward(
        params, atom_feature, edge_feature, atom_coordinate, src, dst,
        attention_weight, p_or_l)
    assert bool(jnp.allclose(att1[..., 0], decay_r, rtol=1e-3, atol=1e-3))
    assert bool(jnp.allclose(aux["dist"], dist_r, rtol=2e-2, atol=2e-2))
    assert bool(jnp.allclose(aux["edge_h"], edge_h_r, rtol=2e-2, atol=2e-2))
    assert bool(jnp.allclose(zk, zk_r, rtol=2e-2, atol=2e-2))
    print("KERNEL_OK")
</pallas_src>

<mosaic_0001>
module attributes {stable_mosaic.version = 11 : i64} {
  func.func @_dmpnn_fused_kernel(%arg0: i32, %arg1: memref<128x70xf32, #tpu.memory_space<vmem>>, %arg2: memref<8x128xf32, #tpu.memory_space<vmem>>, %arg3: memref<14x256xf32, #tpu.memory_space<vmem>>, %arg4: memref<3x128xf32, #tpu.memory_space<vmem>>, %arg5: memref<1x1x256xi32, #tpu.memory_space<vmem>>, %arg6: memref<1x1x256xi32, #tpu.memory_space<vmem>>, %arg7: memref<8x32xf32, #tpu.memory_space<vmem>>, %arg8: memref<70x32xf32, #tpu.memory_space<vmem>>, %arg9: memref<1x32xf32, #tpu.memory_space<vmem>>, %arg10: memref<16x14xf32, #tpu.memory_space<vmem>>, %arg11: memref<16x1xf32, #tpu.memory_space<vmem>>, %arg12: memref<32x16xf32, #tpu.memory_space<vmem>>, %arg13: memref<1x16xf32, #tpu.memory_space<vmem>>, %arg14: memref<16x8xf32, #tpu.memory_space<vmem>>, %arg15: memref<1x8xf32, #tpu.memory_space<vmem>>, %arg16: memref<8x4xf32, #tpu.memory_space<vmem>>, %arg17: memref<1x4xf32, #tpu.memory_space<vmem>>, %arg18: memref<4x1xf32, #tpu.memory_space<vmem>>, %arg19: memref<1x1xf32, #tpu.memory_space<vmem>>, %arg20: memref<8x128xf32, #tpu.memory_space<vmem>>, %arg21: memref<1x1x256xf32, #tpu.memory_space<vmem>>, %arg22: memref<16x256xf32, #tpu.memory_space<vmem>>) attributes {dimension_semantics = [#tpu.dimension_semantics<parallel>], iteration_bounds = array<i64: 2>, scalar_prefetch = 0 : i64, scratch_operands = 0 : i64, tpu.core_type = #tpu.core_type<tc>, window_params = [{transform_indices = @transform_0, window_bounds = array<i64: 128, 70>}, {transform_indices = @transform_1, window_bounds = array<i64: 8, 128>}, {transform_indices = @transform_2, window_bounds = array<i64: 14, 256>}, {transform_indices = @transform_3, window_bounds = array<i64: 3, 128>}, {transform_indices = @transform_4, window_bounds = array<i64: 1, 1, 256>}, {transform_indices = @transform_5, window_bounds = array<i64: 1, 1, 256>}, {transform_indices = @transform_6, window_bounds = array<i64: 8, 32>}, {pipeline_mode = #tpu.pipeline_mode<synchronous>, transform_indices = @transform_7, window_bounds = array<i64: 70, 32>}, {pipeline_mode = #tpu.pipeline_mode<synchronous>, transform_indices = @transform_8, window_bounds = array<i64: 1, 32>}, {pipeline_mode = #tpu.pipeline_mode<synchronous>, transform_indices = @transform_9, window_bounds = array<i64: 16, 14>}, {pipeline_mode = #tpu.pipeline_mode<synchronous>, transform_indices = @transform_10, window_bounds = array<i64: 16, 1>}, {pipeline_mode = #tpu.pipeline_mode<synchronous>, transform_indices = @transform_11, window_bounds = array<i64: 32, 16>}, {pipeline_mode = #tpu.pipeline_mode<synchronous>, transform_indices = @transform_12, window_bounds = array<i64: 1, 16>}, {pipeline_mode = #tpu.pipeline_mode<synchronous>, transform_indices = @transform_13, window_bounds = array<i64: 16, 8>}, {pipeline_mode = #tpu.pipeline_mode<synchronous>, transform_indices = @transform_14, window_bounds = array<i64: 1, 8>}, {pipeline_mode = #tpu.pipeline_mode<synchronous>, transform_indices = @transform_15, window_bounds = array<i64: 8, 4>}, {pipeline_mode = #tpu.pipeline_mode<synchronous>, transform_indices = @transform_16, window_bounds = array<i64: 1, 4>}, {pipeline_mode = #tpu.pipeline_mode<synchronous>, transform_indices = @transform_17, window_bounds = array<i64: 4, 1>}, {pipeline_mode = #tpu.pipeline_mode<synchronous>, transform_indices = @transform_18, window_bounds = array<i64: 1, 1>}, {transform_indices = @transform_19, window_bounds = array<i64: 8, 128>}, {transform_indices = @transform_20, window_bounds = array<i64: 1, 1, 256>}, {transform_indices = @transform_21, window_bounds = array<i64: 16, 256>}]} {
    %c0 = arith.constant 0 : index
    %c0_0 = arith.constant 0 : index
    %0 = vector.load %arg1[%c0, %c0_0] : memref<128x70xf32, #tpu.memory_space<vmem>>, vector<128x70xf32>
    %c0_1 = arith.constant 0 : index
    %c0_2 = arith.constant 0 : index
    %1 = vector.load %arg8[%c0_1, %c0_2] : memref<70x32xf32, #tpu.memory_space<vmem>>, vector<70x32xf32>
    %cst = arith.constant dense<0.000000e+00> : vector<128x32xf32>
    %2 = tpu.matmul %0, %1, %cst {dimension_numbers = #tpu.dot_dimension_numbers<[1], [0], [0], [1], [0, 0, 1, 1], [], []>} : vector<128x70xf32>, vector<70x32xf32>, vector<128x32xf32> -> vector<128x32xf32>
    %c0_3 = arith.constant 0 : index
    %c0_4 = arith.constant 0 : index
    %3 = vector.load %arg9[%c0_3, %c0_4] : memref<1x32xf32, #tpu.memory_space<vmem>>, vector<1x32xf32>
    %4 = vector.broadcast %3 : vector<1x32xf32> to vector<128x32xf32>
    %5 = arith.addf %2, %4 : vector<128x32xf32>
    %cst_5 = arith.constant 0.000000e+00 : f32
    %6 = vector.broadcast %cst_5 : f32 to vector<128x32xf32>
    %7 = arith.maximumf %5, %6 : vector<128x32xf32>
    %c0_6 = arith.constant 0 : index
    %c0_7 = arith.constant 0 : index
    %8 = vector.load %arg10[%c0_6, %c0_7] : memref<16x14xf32, #tpu.memory_space<vmem>>, vector<16x14xf32>
    %c0_8 = arith.constant 0 : index
    %c0_9 = arith.constant 0 : index
    %9 = vector.load %arg3[%c0_8, %c0_9] : memref<14x256xf32, #tpu.memory_space<vmem>>, vector<14x256xf32>
    %cst_10 = arith.constant dense<0.000000e+00> : vector<16x256xf32>
    %10 = tpu.matmul %8, %9, %cst_10 {dimension_numbers = #tpu.dot_dimension_numbers<[1], [0], [0], [1], [0, 0, 1, 1], [], []>} : vector<16x14xf32>, vector<14x256xf32>, vector<16x256xf32> -> vector<16x256xf32>
    %c0_11 = arith.constant 0 : index
    %c0_12 = arith.constant 0 : index
    %11 = vector.load %arg11[%c0_11, %c0_12] : memref<16x1xf32, #tpu.memory_space<vmem>>, vector<16x1xf32>
    %12 = vector.broadcast %11 : vector<16x1xf32> to vector<16x256xf32>
    %13 = arith.addf %10, %12 : vector<16x256xf32>
    %cst_13 = arith.constant 0.000000e+00 : f32
    %14 = vector.broadcast %cst_13 : f32 to vector<16x256xf32>
    %15 = arith.maximumf %13, %14 : vector<16x256xf32>
    %c0_14 = arith.constant 0 : index
    %c0_15 = arith.constant 0 : index
    %16 = vector.load %arg22[%c0_14, %c0_15] : memref<16x256xf32, #tpu.memory_space<vmem>>, vector<16x256xf32>
    tpu.vector_store %arg22[%c0_14, %c0_15], %15 {strides = array<i32>} : memref<16x256xf32, #tpu.memory_space<vmem>>, vector<16x256xf32>,
    %17 = tpu.iota {dimensions = array<i32: 0>} : vector<128x256xi32>
    %c0_16 = arith.constant 0 : index
    %c0_17 = arith.constant 0 : index
    %c0_18 = arith.constant 0 : index
    %18 = vector.load %arg5[%c0_16, %c0_17, %c0_18] : memref<1x1x256xi32, #tpu.memory_space<vmem>>, vector<1x1x256xi32>
    %19 = vector.shape_cast %18 : vector<1x1x256xi32> to vector<1x256xi32>
    %20 = vector.broadcast %19 : vector<1x256xi32> to vector<128x256xi32>
    %21 = arith.cmpi eq, %17, %20 : vector<128x256xi32>
    %22 = arith.extui %21 : vector<128x256xi1> to vector<128x256xi32>
    %23 = arith.sitofp %22 : vector<128x256xi32> to vector<128x256xf32>
    %c0_19 = arith.constant 0 : index
    %c0_20 = arith.constant 0 : index
    %c0_21 = arith.constant 0 : index
    %24 = vector.load %arg6[%c0_19, %c0_20, %c0_21] : memref<1x1x256xi32, #tpu.memory_space<vmem>>, vector<1x1x256xi32>
    %25 = vector.shape_cast %24 : vector<1x1x256xi32> to vector<1x256xi32>
    %26 = vector.broadcast %25 : vector<1x256xi32> to vector<128x256xi32>
    %27 = arith.cmpi eq, %17, %26 : vector<128x256xi32>
    %28 = arith.extui %27 : vector<128x256xi1> to vector<128x256xi32>
    %29 = arith.sitofp %28 : vector<128x256xi32> to vector<128x256xf32>
    %30 = arith.subf %23, %29 : vector<128x256xf32>
    %c0_22 = arith.constant 0 : index
    %c0_23 = arith.constant 0 : index
    %31 = vector.load %arg4[%c0_22, %c0_23] : memref<3x128xf32, #tpu.memory_space<vmem>>, vector<3x128xf32>
    %cst_24 = arith.constant dense<0.000000e+00> : vector<3x256xf32>
    %32 = tpu.matmul %31, %30, %cst_24 {dimension_numbers = #tpu.dot_dimension_numbers<[1], [0], [0], [1], [0, 0, 1, 1], [], []>} : vector<3x128xf32>, vector<128x256xf32>, vector<3x256xf32> -> vector<3x256xf32>
    %33 = vector.extract_strided_slice %32 {offsets = [0, 0], sizes = [1, 256], strides = [1, 1]} : vector<3x256xf32> to vector<1x256xf32>
    %34 = vector.extract_strided_slice %32 {offsets = [1, 0], sizes = [1, 256], strides = [1, 1]} : vector<3x256xf32> to vector<1x256xf32>
    %35 = vector.extract_strided_slice %32 {offsets = [2, 0], sizes = [1, 256], strides = [1, 1]} : vector<3x256xf32> to vector<1x256xf32>
    %36 = arith.mulf %33, %33 : vector<1x256xf32>
    %37 = arith.mulf %34, %34 : vector<1x256xf32>
    %38 = arith.addf %36, %37 : vector<1x256xf32>
    %39 = arith.mulf %35, %35 : vector<1x256xf32>
    %40 = arith.addf %38, %39 : vector<1x256xf32>
    %41 = math.sqrt %40 : vector<1x256xf32>
    %c0_25 = arith.constant 0 : index
    %c0_26 = arith.constant 0 : index
    %c0_27 = arith.constant 0 : index
    %42 = vector.load %arg21[%c0_25, %c0_26, %c0_27] : memref<1x1x256xf32, #tpu.memory_space<vmem>>, vector<1x1x256xf32>
    %43 = vector.shape_cast %42 : vector<1x1x256xf32> to vector<1x256xf32>
    %44 = vector.shape_cast %41 : vector<1x256xf32> to vector<1x1x256xf32>
    tpu.vector_store %arg21[%c0_25, %c0_26, %c0_27], %44 {strides = array<i32>} : memref<1x1x256xf32, #tpu.memory_space<vmem>>, vector<1x1x256xf32>,
    %c0_28 = arith.constant 0 : index
    %c0_29 = arith.constant 0 : index
    %45 = vector.load %arg7[%c0_28, %c0_29] : memref<8x32xf32, #tpu.memory_space<vmem>>, vector<8x32xf32>
    %cst_30 = arith.constant 0.000000e+00 : f32
    %46 = vector.broadcast %cst_30 : f32 to vector<8x32xf32>
    %47 = arith.cmpf oeq, %45, %46 : vector<8x32xf32>
    %48 = math.log %45 : vector<8x32xf32>
    %cst_31 = arith.constant 2.000000e+00 : f32
    %49 = vector.broadcast %cst_31 : f32 to vector<8x32xf32>
    %50 = arith.mulf %48, %49 : vector<8x32xf32>
    %cst_32 = arith.constant -1.000000e+00 : f32
    %51 = vector.broadcast %cst_32 : f32 to vector<8x32xf32>
    %52 = arith.select %47, %51, %50 : vector<8x32xi1>, vector<8x32xf32>
    %cst_33 = arith.constant 1.000000e+00 : f32
    %53 = vector.broadcast %cst_33 : f32 to vector<8x32xf32>
    %54 = arith.cmpf oeq, %45, %53 : vector<8x32xf32>
    %cst_34 = arith.constant 1.000000e+00 : f32
    %55 = vector.broadcast %cst_34 : f32 to vector<8x32xf32>
    %56 = arith.select %54, %55, %52 : vector<8x32xi1>, vector<8x32xf32>
    %c0_35 = arith.constant 0 : index
    %c0_36 = arith.constant 0 : index
    %57 = vector.load %arg2[%c0_35, %c0_36] : memref<8x128xf32, #tpu.memory_space<vmem>>, vector<8x128xf32>
    %cst_37 = arith.constant dense<0.000000e+00> : vector<8x32xf32>
    %58 = tpu.matmul %57, %7, %cst_37 {dimension_numbers = #tpu.dot_dimension_numbers<[1], [0], [0], [1], [0, 0, 1, 1], [], []>} : vector<8x128xf32>, vector<128x32xf32>, vector<8x32xf32> -> vector<8x32xf32>
    %c0_38 = arith.constant 0 : index
    %c0_39 = arith.constant 0 : index
    %59 = vector.load %arg12[%c0_38, %c0_39] : memref<32x16xf32, #tpu.memory_space<vmem>>, vector<32x16xf32>
    %cst_40 = arith.constant dense<0.000000e+00> : vector<8x16xf32>
    %60 = tpu.matmul %58, %59, %cst_40 {dimension_numbers = #tpu.dot_dimension_numbers<[1], [0], [0], [1], [0, 0, 1, 1], [], []>} : vector<8x32xf32>, vector<32x16xf32>, vector<8x16xf32> -> vector<8x16xf32>
    %c0_41 = arith.constant 0 : index
    %c0_42 = arith.constant 0 : index
    %61 = vector.load %arg13[%c0_41, %c0_42] : memref<1x16xf32, #tpu.memory_space<vmem>>, vector<1x16xf32>
    %62 = vector.broadcast %61 : vector<1x16xf32> to vector<8x16xf32>
    %63 = arith.addf %60, %62 : vector<8x16xf32>
    %cst_43 = arith.constant 0.000000e+00 : f32
    %64 = vector.broadcast %cst_43 : f32 to vector<8x16xf32>
    %65 = arith.maximumf %63, %64 : vector<8x16xf32>
    %c0_44 = arith.constant 0 : index
    %c0_45 = arith.constant 0 : index
    %66 = vector.load %arg14[%c0_44, %c0_45] : memref<16x8xf32, #tpu.memory_space<vmem>>, vector<16x8xf32>
    %cst_46 = arith.constant dense<0.000000e+00> : vector<8x8xf32>
    %67 = tpu.matmul %65, %66, %cst_46 {dimension_numbers = #tpu.dot_dimension_numbers<[1], [0], [0], [1], [0, 0, 1, 1], [], []>} : vector<8x16xf32>, vector<16x8xf32>, vector<8x8xf32> -> vector<8x8xf32>
    %c0_47 = arith.constant 0 : index
    %c0_48 = arith.constant 0 : index
    %68 = vector.load %arg15[%c0_47, %c0_48] : memref<1x8xf32, #tpu.memory_space<vmem>>, vector<1x8xf32>
    %69 = vector.broadcast %68 : vector<1x8xf32> to vector<8x8xf32>
    %70 = arith.addf %67, %69 : vector<8x8xf32>
    %cst_49 = arith.constant 0.000000e+00 : f32
    %71 = vector.broadcast %cst_49 : f32 to vector<8x8xf32>
    %72 = arith.maximumf %70, %71 : vector<8x8xf32>
    %c0_50 = arith.constant 0 : index
    %c0_51 = arith.constant 0 : index
    %73 = vector.load %arg16[%c0_50, %c0_51] : memref<8x4xf32, #tpu.memory_space<vmem>>, vector<8x4xf32>
    %cst_52 = arith.constant dense<0.000000e+00> : vector<8x4xf32>
    %74 = tpu.matmul %72, %73, %cst_52 {dimension_numbers = #tpu.dot_dimension_numbers<[1], [0], [0], [1], [0, 0, 1, 1], [], []>} : vector<8x8xf32>, vector<8x4xf32>, vector<8x4xf32> -> vector<8x4xf32>
    %c0_53 = arith.constant 0 : index
    %c0_54 = arith.constant 0 : index
    %75 = vector.load %arg17[%c0_53, %c0_54] : memref<1x4xf32, #tpu.memory_space<vmem>>, vector<1x4xf32>
    %76 = vector.broadcast %75 : vector<1x4xf32> to vector<8x4xf32>
    %77 = arith.addf %74, %76 : vector<8x4xf32>
    %cst_55 = arith.constant 0.000000e+00 : f32
    %78 = vector.broadcast %cst_55 : f32 to vector<8x4xf32>
    %79 = arith.maximumf %77, %78 : vector<8x4xf32>
    %c0_56 = arith.constant 0 : index
    %c0_57 = arith.constant 0 : index
    %80 = vector.load %arg18[%c0_56, %c0_57] : memref<4x1xf32, #tpu.memory_space<vmem>>, vector<4x1xf32>
    %cst_58 = arith.constant dense<0.000000e+00> : vector<8x1xf32>
    %81 = tpu.matmul %79, %80, %cst_58 {dimension_numbers = #tpu.dot_dimension_numbers<[1], [0], [0], [1], [0, 0, 1, 1], [], []>} : vector<8x4xf32>, vector<4x1xf32>, vector<8x1xf32> -> vector<8x1xf32>
    %c0_59 = arith.constant 0 : index
    %c0_60 = arith.constant 0 : index
    %82 = vector.load %arg19[%c0_59, %c0_60] : memref<1x1xf32, #tpu.memory_space<vmem>>, vector<1x1xf32>
    %83 = vector.broadcast %82 : vector<1x1xf32> to vector<8x1xf32>
    %84 = arith.addf %81, %83 : vector<8x1xf32>
    %cst_61 = arith.constant 0.000000e+00 : f32
    %85 = vector.broadcast %cst_61 : f32 to vector<8x128xf32>
    %c0_62 = arith.constant 0 : index
    %c0_63 = arith.constant 0 : index
    %86 = vector.load %arg20[%c0_62, %c0_63] : memref<8x128xf32, #tpu.memory_space<vmem>>, vector<8x128xf32>
    tpu.vector_store %arg20[%c0_62, %c0_63], %85 {strides = array<i32>} : memref<8x128xf32, #tpu.memory_space<vmem>>, vector<8x128xf32>,
    %c0_64 = arith.constant 0 : index
    %c0_65 = arith.constant 0 : index
    %87 = vector.load %arg20[%c0_64, %c0_65] : memref<8x128xf32, #tpu.memory_space<vmem>>, vector<8x1xf32>
    tpu.vector_store %arg20[%c0_64, %c0_65], %84 {strides = array<i32>} : memref<8x128xf32, #tpu.memory_space<vmem>>, vector<8x1xf32>,
    %c0_66 = arith.constant 0 : index
    %c1 = arith.constant 1 : index
    %88 = vector.load %arg20[%c0_66, %c1] : memref<8x128xf32, #tpu.memory_space<vmem>>, vector<8x32xf32>
    tpu.vector_store %arg20[%c0_66, %c1], %56 {strides = array<i32>} : memref<8x128xf32, #tpu.memory_space<vmem>>, vector<8x32xf32>,
    return
  }
  func.func @transform_0(%arg0: i32) -> (i32, i32) {
    %c0_i32 = arith.constant 0 : i32
    %c0_i32_0 = arith.constant 0 : i32
    return %arg0, %c0_i32 : i32, i32
  }
  func.func @transform_1(%arg0: i32) -> (i32, i32) {
    %c0_i32 = arith.constant 0 : i32
    %c0_i32_0 = arith.constant 0 : i32
    return %arg0, %c0_i32 : i32, i32
  }
  func.func @transform_2(%arg0: i32) -> (i32, i32) {
    %c0_i32 = arith.constant 0 : i32
    %c0_i32_0 = arith.constant 0 : i32
    return %c0_i32, %arg0 : i32, i32
  }
  func.func @transform_3(%arg0: i32) -> (i32, i32) {
    %c0_i32 = arith.constant 0 : i32
    %c0_i32_0 = arith.constant 0 : i32
    return %c0_i32, %arg0 : i32, i32
  }
  func.func @transform_4(%arg0: i32) -> (i32, i32, i32) {
    %c0_i32 = arith.constant 0 : i32
    %c0_i32_0 = arith.constant 0 : i32
    %c0_i32_1 = arith.constant 0 : i32
    return %arg0, %c0_i32, %c0_i32_0 : i32, i32, i32
  }
  func.func @transform_5(%arg0: i32) -> (i32, i32, i32) {
    %c0_i32 = arith.constant 0 : i32
    %c0_i32_0 = arith.constant 0 : i32
    %c0_i32_1 = arith.constant 0 : i32
    return %arg0, %c0_i32, %c0_i32_0 : i32, i32, i32
  }
  func.func @transform_6(%arg0: i32) -> (i32, i32) {
    %c0_i32 = arith.constant 0 : i32
    %c0_i32_0 = arith.constant 0 : i32
    return %arg0, %c0_i32 : i32, i32
  }
  func.func @transform_7(%arg0: i32) -> (i32, i32) {
    %c0_i32 = arith.constant 0 : i32
    %c0_i32_0 = arith.constant 0 : i32
    %c0_i32_1 = arith.constant 0 : i32
    return %c0_i32, %c0_i32_0 : i32, i32
  }
  func.func @transform_8(%arg0: i32) -> (i32, i32) {
    %c0_i32 = arith.constant 0 : i32
    %c0_i32_0 = arith.constant 0 : i32
    %c0_i32_1 = arith.constant 0 : i32
    return %c0_i32, %c0_i32_0 : i32, i32
  }
  func.func @transform_9(%arg0: i32) -> (i32, i32) {
    %c0_i32 = arith.constant 0 : i32
    %c0_i32_0 = arith.constant 0 : i32
    %c0_i32_1 = arith.constant 0 : i32
    return %c0_i32, %c0_i32_0 : i32, i32
  }
  func.func @transform_10(%arg0: i32) -> (i32, i32) {
    %c0_i32 = arith.constant 0 : i32
    %c0_i32_0 = arith.constant 0 : i32
    %c0_i32_1 = arith.constant 0 : i32
    return %c0_i32, %c0_i32_0 : i32, i32
  }
  func.func @transform_11(%arg0: i32) -> (i32, i32) {
    %c0_i32 = arith.constant 0 : i32
    %c0_i32_0 = arith.constant 0 : i32
    %c0_i32_1 = arith.constant 0 : i32
    return %c0_i32, %c0_i32_0 : i32, i32
  }
  func.func @transform_12(%arg0: i32) -> (i32, i32) {
    %c0_i32 = arith.constant 0 : i32
    %c0_i32_0 = arith.constant 0 : i32
    %c0_i32_1 = arith.constant 0 : i32
    return %c0_i32, %c0_i32_0 : i32, i32
  }
  func.func @transform_13(%arg0: i32) -> (i32, i32) {
    %c0_i32 = arith.constant 0 : i32
    %c0_i32_0 = arith.constant 0 : i32
    %c0_i32_1 = arith.constant 0 : i32
    return %c0_i32, %c0_i32_0 : i32, i32
  }
  func.func @transform_14(%arg0: i32) -> (i32, i32) {
    %c0_i32 = arith.constant 0 : i32
    %c0_i32_0 = arith.constant 0 : i32
    %c0_i32_1 = arith.constant 0 : i32
    return %c0_i32, %c0_i32_0 : i32, i32
  }
  func.func @transform_15(%arg0: i32) -> (i32, i32) {
    %c0_i32 = arith.constant 0 : i32
    %c0_i32_0 = arith.constant 0 : i32
    %c0_i32_1 = arith.constant 0 : i32
    return %c0_i32, %c0_i32_0 : i32, i32
  }
  func.func @transform_16(%arg0: i32) -> (i32, i32) {
    %c0_i32 = arith.constant 0 : i32
    %c0_i32_0 = arith.constant 0 : i32
    %c0_i32_1 = arith.constant 0 : i32
    return %c0_i32, %c0_i32_0 : i32, i32
  }
  func.func @transform_17(%arg0: i32) -> (i32, i32) {
    %c0_i32 = arith.constant 0 : i32
    %c0_i32_0 = arith.constant 0 : i32
    %c0_i32_1 = arith.constant 0 : i32
    return %c0_i32, %c0_i32_0 : i32, i32
  }
  func.func @transform_18(%arg0: i32) -> (i32, i32) {
    %c0_i32 = arith.constant 0 : i32
    %c0_i32_0 = arith.constant 0 : i32
    %c0_i32_1 = arith.constant 0 : i32
    return %c0_i32, %c0_i32_0 : i32, i32
  }
  func.func @transform_19(%arg0: i32) -> (i32, i32) {
    %c0_i32 = arith.constant 0 : i32
    %c0_i32_0 = arith.constant 0 : i32
    return %arg0, %c0_i32 : i32, i32
  }
  func.func @transform_20(%arg0: i32) -> (i32, i32, i32) {
    %c0_i32 = arith.constant 0 : i32
    %c0_i32_0 = arith.constant 0 : i32
    %c0_i32_1 = arith.constant 0 : i32
    return %arg0, %c0_i32, %c0_i32_0 : i32, i32, i32
  }
  func.func @transform_21(%arg0: i32) -> (i32, i32) {
    %c0_i32 = arith.constant 0 : i32
    %c0_i32_0 = arith.constant 0 : i32
    return %c0_i32, %arg0 : i32, i32
  }
}

</mosaic_0001>

<llo_original>
// kernel: dmpnn_forward.1
$region0: #{dmpnn_forward.1}
  #allocation0 [shape = 'u32[]', space=smem, size = 0x4, offset = 0x4, fixed_abs, tag = 'smem constant byte address 0x4 - core index']
  #allocation1 [shape = 'u32[144,128]{1,0:T(1,128)}', space=vmem, size = 0x12000, scoped, tag = 'internal scratch']
  #allocation2 [shape = 'f32[1,1]{1,0:T(1,128)S(1)}', space=vmem, size = 0x200, scoped, tag = 'scoped memory for dmpnn_forward.1']
  %s0 = inlined_call_operand.vmem [shape: f32[256,70], index: 0, kind: input, shape index: {}]
  %s1 = inlined_call_operand.vmem [shape: f32[16,128], index: 1, kind: input, shape index: {}]
  %s2 = inlined_call_operand.vmem [shape: f32[14,512], index: 2, kind: input, shape index: {}]
  %s3 = inlined_call_operand.vmem [shape: f32[3,256], index: 3, kind: input, shape index: {}]
  %s4 = inlined_call_operand.vmem [shape: s32[2,1,256], index: 4, kind: input, shape index: {}]
  %s5 = inlined_call_operand.vmem [shape: s32[2,1,256], index: 5, kind: input, shape index: {}]
  %s6 = inlined_call_operand.vmem [shape: f32[16,32], index: 6, kind: input, shape index: {}]
  %s7 = inlined_call_operand.vmem [shape: f32[70,32], index: 7, kind: input, shape index: {}]
  %s8 = inlined_call_operand.vmem [shape: f32[1,32], index: 8, kind: input, shape index: {}]
  %s9 = inlined_call_operand.vmem [shape: f32[16,14], index: 9, kind: input, shape index: {}]
  %s10 = inlined_call_operand.vmem [shape: f32[16,1], index: 10, kind: input, shape index: {}]
  %s11 = inlined_call_operand.vmem [shape: f32[32,16], index: 11, kind: input, shape index: {}]
  %s12 = inlined_call_operand.vmem [shape: f32[1,16], index: 12, kind: input, shape index: {}]
  %s13 = inlined_call_operand.vmem [shape: f32[16,8], index: 13, kind: input, shape index: {}]
  %s14 = inlined_call_operand.vmem [shape: f32[1,8], index: 14, kind: input, shape index: {}]
  %s15 = inlined_call_operand.vmem [shape: f32[8,4], index: 15, kind: input, shape index: {}]
  %s16 = inlined_call_operand.vmem [shape: f32[1,4], index: 16, kind: input, shape index: {}]
  %s17 = inlined_call_operand.vmem [shape: f32[4,1], index: 17, kind: input, shape index: {}]
  %s18 = inlined_call_operand.<no memory space> [shape: f32[1,1], index: 18, kind: input, shape index: {}]
  %s19 = inlined_call_operand.vmem [shape: f32[16,128], index: 19, kind: output, shape index: {0}]
  %s20 = inlined_call_operand.vmem [shape: f32[2,1,256], index: 20, kind: output, shape index: {1}]
  %s21 = inlined_call_operand.vmem [shape: f32[16,512], index: 21, kind: output, shape index: {2}]
  %22 = xla_tuple %s19, %s20, %s21
  %s23 = sld [smem:[#allocation0]]
  $region167: #{dmpnn_forward.1} parent=0
    _
  %s25 = ssub.s32 1, %s23
  %s26 = scalar_select 0, %s25, %s23
  %v27 = vstv %s18
  %28 = vst [vmem:[#allocation2] sm:$0x1] %v27
  $region1: #{dmpnn_forward.1} parent=0
    #allocation3 [shape = 'u8[32768]{0}', space=vmem, size = 0x8000, scoped, tag = 'input window, operand 2']
    #allocation4 [shape = 'u8[32768]{0}', space=vmem, size = 0x8000, scoped, tag = 'output window, operand 2']
    loop: start=0, step=1, limit=4
    $region2: #{dmpnn_forward.1} parent=1 // loop_pre_header
      _
    $region3: #{dmpnn_forward.1} parent=1 // loop_header
      %s30 = sphi 0, %s34
      %p31 = scmp.ge.s32.totalorder %s30, 4
      %s40 = sphi 0, %s42
      %s43 = sphi 0, %s40
      %s44 = sphi 0, %s43
      %s60 = sphi 0, %s44
      %s66 = sphi 0, %s68
      %s69 = sphi 0, %s66
      %s70 = sphi 0, %s69
      %s86 = sphi 0, %s70
      %s92 = sphi 0, %s94
      %s95 = sphi 0, %s92
      %s96 = sphi 0, %s95
      %s112 = sphi 0, %s96
      %s118 = sphi 0, %s120
      %s121 = sphi 0, %s118
      %s122 = sphi 0, %s121
      %s138 = sphi 0, %s122
      %s144 = sphi 0, %s146
      %s147 = sphi 0, %s144
      %s148 = sphi 0, %s147
      %s164 = sphi 0, %s148
      %s170 = sphi 0, %s172
      %s173 = sphi 0, %s170
      %s174 = sphi 0, %s173
      %s190 = sphi 0, %s174
      %s196 = sphi 0, %s198
      %s199 = sphi 0, %s196
      %s200 = sphi 0, %s199
      %s216 = sphi 0, %s200
      %s220 = sphi 0, %s220
      %s222 = sphi 0, %s220
      %s223 = sphi 0, %s222
      %s237 = sphi 0, %s223
      %s241 = sphi 0, %s241
      %s243 = sphi 0, %s241
      %s244 = sphi 0, %s243
      %s258 = sphi 0, %s244
      %s262 = sphi 0, %s262
      %s264 = sphi 0, %s262
      %s265 = sphi 0, %s264
      %s279 = sphi 0, %s265
      %s283 = sphi 0, %s283
      %s285 = sphi 0, %s283
      %s286 = sphi 0, %s285
      %s300 = sphi 0, %s286
      %s304 = sphi 0, %s304
      %s306 = sphi 0, %s304
      %s307 = sphi 0, %s306
      %s321 = sphi 0, %s307
      %s325 = sphi 0, %s325
      %s327 = sphi 0, %s325
      %s328 = sphi 0, %s327
      %s342 = sphi 0, %s328
      %s346 = sphi 0, %s346
      %s348 = sphi 0, %s346
      %s349 = sphi 0, %s348
      %s363 = sphi 0, %s349
      %s367 = sphi 0, %s367
      %s369 = sphi 0, %s367
      %s370 = sphi 0, %s369
      %s384 = sphi 0, %s370
      %s388 = sphi 0, %s388
      %s390 = sphi 0, %s388
      %s391 = sphi 0, %s390
      %s405 = sphi 0, %s391
      %s409 = sphi 0, %s409
      %s411 = sphi 0, %s409
      %s412 = sphi 0, %s411
      %s426 = sphi 0, %s412
      %s430 = sphi 0, %s430
      %s432 = sphi 0, %s430
      %s433 = sphi 0, %s432
      %s447 = sphi 0, %s433
      %s451 = sphi 0, %s451
      %s453 = sphi 0, %s451
      %s454 = sphi 0, %s453
      %s468 = sphi 0, %s454
      %s474 = sphi 0, %s476
      %s477 = sphi 0, %s474
      %s478 = sphi 0, %s477
      %s494 = sphi 0, %s478
      %s500 = sphi 0, %s502
      %s503 = sphi 0, %s500
      %s504 = sphi 0, %s503
      %s520 = sphi 0, %s504
      %s526 = sphi 0, %s528
      %s529 = sphi 0, %s526
      %s530 = sphi 0, %s529
      %s546 = sphi 0, %s530
    $region4: #{dmpnn_forward.1} parent=1 // loop_header_branch
      %33 = sbr.rel (%p31) target = $region8
    $region5: #{dmpnn_forward.1} parent=1 // loop_body
      %s35 = ssub.s32 %s30, 1
      %s36 = ssub.s32 %s30, 2
      %s37 = sadd.s32 %s30, 1
      %s38 = ssub.s32 %s30, %s37
      %p39 = scmp.eq.s32.totalorder %s38, 0
      %s41 = sadd.s32 %s40, 1
      %s42 = scalar_select %p39, %s40, %s41
      %p45 = pneg %p39
      %p46 = scmp.eq.s32.totalorder %s30, 1
      %p47 = por %p45, %p46
      %p48 = scmp.ne.s32.totalorder %s40, %s43
      %p49 = scmp.eq.s32.totalorder %s30, 0
      %p50 = por %p48, %p49
      %p51 = scmp.ne.s32.totalorder %s40, %s43
      %p52 = scmp.eq.s32.totalorder %s35, 1
      %p53 = por %p51, %p52
      %p54 = scmp.ne.s32.totalorder %s43, %s44
      %p55 = scmp.eq.s32.totalorder %s35, 0
      %p56 = por %p54, %p55
      %p57 = scmp.ne.s32.totalorder %s43, %s44
      %p58 = scmp.eq.s32.totalorder %s36, 1
      %p59 = por %p57, %p58
      %p61 = scmp.ne.s32.totalorder %s44, %s60
      %p62 = scmp.eq.s32.totalorder %s36, 0
      %p63 = por %p61, %p62
      %s64 = ssub.s32 %s30, %s37
      %p65 = scmp.eq.s32.totalorder %s64, 0
      %s67 = sadd.s32 %s66, 1
      %s68 = scalar_select %p65, %s66, %s67
      %p71 = pneg %p65
      %p72 = scmp.eq.s32.totalorder %s30, 1
      %p73 = por %p71, %p72
      %p74 = scmp.ne.s32.totalorder %s66, %s69
      %p75 = scmp.eq.s32.totalorder %s30, 0
      %p76 = por %p74, %p75
      %p77 = scmp.ne.s32.totalorder %s66, %s69
      %p78 = scmp.eq.s32.totalorder %s35, 1
      %p79 = por %p77, %p78
      %p80 = scmp.ne.s32.totalorder %s69, %s70
      %p81 = scmp.eq.s32.totalorder %s35, 0
      %p82 = por %p80, %p81
      %p83 = scmp.ne.s32.totalorder %s69, %s70
      %p84 = scmp.eq.s32.totalorder %s36, 1
      %p85 = por %p83, %p84
      %p87 = scmp.ne.s32.totalorder %s70, %s86
      %p88 = scmp.eq.s32.totalorder %s36, 0
      %p89 = por %p87, %p88
      %s90 = ssub.s32 %s30, %s37
      %p91 = scmp.eq.s32.totalorder %s90, 0
      %s93 = sadd.s32 %s92, 1
      %s94 = scalar_select %p91, %s92, %s93
      %p97 = pneg %p91
      %p98 = scmp.eq.s32.totalorder %s30, 1
      %p99 = por %p97, %p98
      %p100 = scmp.ne.s32.totalorder %s92, %s95
      %p101 = scmp.eq.s32.totalorder %s30, 0
      %p102 = por %p100, %p101
      %p103 = scmp.ne.s32.totalorder %s92, %s95
      %p104 = scmp.eq.s32.totalorder %s35, 1
      %p105 = por %p103, %p104
      %p106 = scmp.ne.s32.totalorder %s95, %s96
      %p107 = scmp.eq.s32.totalorder %s35, 0
      %p108 = por %p106, %p107
      %p109 = scmp.ne.s32.totalorder %s95, %s96
      %p110 = scmp.eq.s32.totalorder %s36, 1
      %p111 = por %p109, %p110
      %p113 = scmp.ne.s32.totalorder %s96, %s112
      %p114 = scmp.eq.s32.totalorder %s36, 0
      %p115 = por %p113, %p114
      %s116 = ssub.s32 %s30, %s37
      %p117 = scmp.eq.s32.totalorder %s116, 0
      %s119 = sadd.s32 %s118, 1
      %s120 = scalar_select %p117, %s118, %s119
      %p123 = pneg %p117
      %p124 = scmp.eq.s32.totalorder %s30, 1
      %p125 = por %p123, %p124
      %p126 = scmp.ne.s32.totalorder %s118, %s121
      %p127 = scmp.eq.s32.totalorder %s30, 0
      %p128 = por %p126, %p127
      %p129 = scmp.ne.s32.totalorder %s118, %s121
      %p130 = scmp.eq.s32.totalorder %s35, 1
      %p131 = por %p129, %p130
      %p132 = scmp.ne.s32.totalorder %s121, %s122
      %p133 = scmp.eq.s32.totalorder %s35, 0
      %p134 = por %p132, %p133
      %p135 = scmp.ne.s32.totalorder %s121, %s122
      %p136 = scmp.eq.s32.totalorder %s36, 1
      %p137 = por %p135, %p136
      %p139 = scmp.ne.s32.totalorder %s122, %s138
      %p140 = scmp.eq.s32.totalorder %s36, 0
      %p141 = por %p139, %p140
      %s142 = ssub.s32 %s30, %s37
      %p143 = scmp.eq.s32.totalorder %s142, 0
      %s145 = sadd.s32 %s144, 1
      %s146 = scalar_select %p143, %s144, %s145
      %p149 = pneg %p143
      %p150 = scmp.eq.s32.totalorder %s30, 1
      %p151 = por %p149, %p150
      %p152 = scmp.ne.s32.totalorder %s144, %s147
      %p153 = scmp.eq.s32.totalorder %s30, 0
      %p154 = por %p152, %p153
      %p155 = scmp.ne.s32.totalorder %s144, %s147
      %p156 = scmp.eq.s32.totalorder %s35, 1
      %p157 = por %p155, %p156
      %p158 = scmp.ne.s32.totalorder %s147, %s148
      %p159 = scmp.eq.s32.totalorder %s35, 0
      %p160 = por %p158, %p159
      %p161 = scmp.ne.s32.totalorder %s147, %s148
      %p162 = scmp.eq.s32.totalorder %s36, 1
      %p163 = por %p161, %p162
      %p165 = scmp.ne.s32.totalorder %s148, %s164
      %p166 = scmp.eq.s32.totalorder %s36, 0
      %p167 = por %p165, %p166
      %s168 = ssub.s32 %s30, %s37
      %p169 = scmp.eq.s32.totalorder %s168, 0
      %s171 = sadd.s32 %s170, 1
      %s172 = scalar_select %p169, %s170, %s171
      %p175 = pneg %p169
      %p176 = scmp.eq.s32.totalorder %s30, 1
      %p177 = por %p175, %p176
      %p178 = scmp.ne.s32.totalorder %s170, %s173
      %p179 = scmp.eq.s32.totalorder %s30, 0
      %p180 = por %p178, %p179
      %p181 = scmp.ne.s32.totalorder %s170, %s173
      %p182 = scmp.eq.s32.totalorder %s35, 1
      %p183 = por %p181, %p182
      %p184 = scmp.ne.s32.totalorder %s173, %s174
      %p185 = scmp.eq.s32.totalorder %s35, 0
      %p186 = por %p184, %p185
      %p187 = scmp.ne.s32.totalorder %s173, %s174
      %p188 = scmp.eq.s32.totalorder %s36, 1
      %p189 = por %p187, %p188
      %p191 = scmp.ne.s32.totalorder %s174, %s190
      %p192 = scmp.eq.s32.totalorder %s36, 0
      %p193 = por %p191, %p192
      %s194 = ssub.s32 %s30, %s37
      %p195 = scmp.eq.s32.totalorder %s194, 0
      %s197 = sadd.s32 %s196, 1
      %s198 = scalar_select %p195, %s196, %s197
      %p201 = pneg %p195
      %p202 = scmp.eq.s32.totalorder %s30, 1
      %p203 = por %p201, %p202
      %p204 = scmp.ne.s32.totalorder %s196, %s199
      %p205 = scmp.eq.s32.totalorder %s30, 0
      %p206 = por %p204, %p205
      %p207 = scmp.ne.s32.totalorder %s196, %s199
      %p208 = scmp.eq.s32.totalorder %s35, 1
      %p209 = por %p207, %p208
      %p210 = scmp.ne.s32.totalorder %s199, %s200
      %p211 = scmp.eq.s32.totalorder %s35, 0
      %p212 = por %p210, %p211
      %p213 = scmp.ne.s32.totalorder %s199, %s200
      %p214 = scmp.eq.s32.totalorder %s36, 1
      %p215 = por %p213, %p214
      %p217 = scmp.ne.s32.totalorder %s200, %s216
      %p218 = scmp.eq.s32.totalorder %s36, 0
      %p219 = por %p217, %p218
      %s221 = sadd.s32 %s220, 1
      %p224 = scmp.eq.s32.totalorder %s30, 1
      %p225 = scmp.ne.s32.totalorder %s220, %s222
      %p226 = scmp.eq.s32.totalorder %s30, 0
      %p227 = por %p225, %p226
      %p228 = scmp.ne.s32.totalorder %s220, %s222
      %p229 = scmp.eq.s32.totalorder %s35, 1
      %p230 = por %p228, %p229
      %p231 = scmp.ne.s32.totalorder %s222, %s223
      %p232 = scmp.eq.s32.totalorder %s35, 0
      %p233 = por %p231, %p232
      %p234 = scmp.ne.s32.totalorder %s222, %s223
      %p235 = scmp.eq.s32.totalorder %s36, 1
      %p236 = por %p234, %p235
      %p238 = scmp.ne.s32.totalorder %s223, %s237
      %p239 = scmp.eq.s32.totalorder %s36, 0
      %p240 = por %p238, %p239
      %s242 = sadd.s32 %s241, 1
      %p245 = scmp.eq.s32.totalorder %s30, 1
      %p246 = scmp.ne.s32.totalorder %s241, %s243
      %p247 = scmp.eq.s32.totalorder %s30, 0
      %p248 = por %p246, %p247
      %p249 = scmp.ne.s32.totalorder %s241, %s243
      %p250 = scmp.eq.s32.totalorder %s35, 1
      %p251 = por %p249, %p250
      %p252 = scmp.ne.s32.totalorder %s243, %s244
      %p253 = scmp.eq.s32.totalorder %s35, 0
      %p254 = por %p252, %p253
      %p255 = scmp.ne.s32.totalorder %s243, %s244
      %p256 = scmp.eq.s32.totalorder %s36, 1
      %p257 = por %p255, %p256
      %p259 = scmp.ne.s32.totalorder %s244, %s258
      %p260 = scmp.eq.s32.totalorder %s36, 0
      %p261 = por %p259, %p260
      %s263 = sadd.s32 %s262, 1
      %p266 = scmp.eq.s32.totalorder %s30, 1
      %p267 = scmp.ne.s32.totalorder %s262, %s264
      %p268 = scmp.eq.s32.totalorder %s30, 0
      %p269 = por %p267, %p268
      %p270 = scmp.ne.s32.totalorder %s262, %s264
      %p271 = scmp.eq.s32.totalorder %s35, 1
      %p272 = por %p270, %p271
      %p273 = scmp.ne.s32.totalorder %s264, %s265
      %p274 = scmp.eq.s32.totalorder %s35, 0
      %p275 = por %p273, %p274
      %p276 = scmp.ne.s32.totalorder %s264, %s265
      %p277 = scmp.eq.s32.totalorder %s36, 1
      %p278 = por %p276, %p277
      %p280 = scmp.ne.s32.totalorder %s265, %s279
      %p281 = scmp.eq.s32.totalorder %s36, 0
      %p282 = por %p280, %p281
      %s284 = sadd.s32 %s283, 1
      %p287 = scmp.eq.s32.totalorder %s30, 1
      %p288 = scmp.ne.s32.totalorder %s283, %s285
      %p289 = scmp.eq.s32.totalorder %s30, 0
      %p290 = por %p288, %p289
      %p291 = scmp.ne.s32.totalorder %s283, %s285
      %p292 = scmp.eq.s32.totalorder %s35, 1
      %p293 = por %p291, %p292
      %p294 = scmp.ne.s32.totalorder %s285, %s286
      %p295 = scmp.eq.s32.totalorder %s35, 0
      %p296 = por %p294, %p295
      %p297 = scmp.ne.s32.totalorder %s285, %s286
      %p298 = scmp.eq.s32.totalorder %s36, 1
      %p299 = por %p297, %p298
      %p301 = scmp.ne.s32.totalorder %s286, %s300
      %p302 = scmp.eq.s32.totalorder %s36, 0
      %p303 = por %p301, %p302
      %s305 = sadd.s32 %s304, 1
      %p308 = scmp.eq.s32.totalorder %s30, 1
      %p309 = scmp.ne.s32.totalorder %s304, %s306
      %p310 = scmp.eq.s32.totalorder %s30, 0
      %p311 = por %p309, %p310
      %p312 = scmp.ne.s32.totalorder %s304, %s306
      %p313 = scmp.eq.s32.totalorder %s35, 1
      %p314 = por %p312, %p313
      %p315 = scmp.ne.s32.totalorder %s306, %s307
      %p316 = scmp.eq.s32.totalorder %s35, 0
      %p317 = por %p315, %p316
      %p318 = scmp.ne.s32.totalorder %s306, %s307
      %p319 = scmp.eq.s32.totalorder %s36, 1
      %p320 = por %p318, %p319
      %p322 = scmp.ne.s32.totalorder %s307, %s321
      %p323 = scmp.eq.s32.totalorder %s36, 0
      %p324 = por %p322, %p323
      %s326 = sadd.s32 %s325, 1
      %p329 = scmp.eq.s32.totalorder %s30, 1
      %p330 = scmp.ne.s32.totalorder %s325, %s327
      %p331 = scmp.eq.s32.totalorder %s30, 0
      %p332 = por %p330, %p331
      %p333 = scmp.ne.s32.totalorder %s325, %s327
      %p334 = scmp.eq.s32.totalorder %s35, 1
      %p335 = por %p333, %p334
      %p336 = scmp.ne.s32.totalorder %s327, %s328
      %p337 = scmp.eq.s32.totalorder %s35, 0
      %p338 = por %p336, %p337
      %p339 = scmp.ne.s32.totalorder %s327, %s328
      %p340 = scmp.eq.s32.totalorder %s36, 1
      %p341 = por %p339, %p340
      %p343 = scmp.ne.s32.totalorder %s328, %s342
      %p344 = scmp.eq.s32.totalorder %s36, 0
      %p345 = por %p343, %p344
      %s347 = sadd.s32 %s346, 1
      %p350 = scmp.eq.s32.totalorder %s30, 1
      %p351 = scmp.ne.s32.totalorder %s346, %s348
      %p352 = scmp.eq.s32.totalorder %s30, 0
      %p353 = por %p351, %p352
      %p354 = scmp.ne.s32.totalorder %s346, %s348
      %p355 = scmp.eq.s32.totalorder %s35, 1
      %p356 = por %p354, %p355
      %p357 = scmp.ne.s32.totalorder %s348, %s349
      %p358 = scmp.eq.s32.totalorder %s35, 0
      %p359 = por %p357, %p358
      %p360 = scmp.ne.s32.totalorder %s348, %s349
      %p361 = scmp.eq.s32.totalorder %s36, 1
      %p362 = por %p360, %p361
      %p364 = scmp.ne.s32.totalorder %s349, %s363
      %p365 = scmp.eq.s32.totalorder %s36, 0
      %p366 = por %p364, %p365
      %s368 = sadd.s32 %s367, 1
      %p371 = scmp.eq.s32.totalorder %s30, 1
      %p372 = scmp.ne.s32.totalorder %s367, %s369
      %p373 = scmp.eq.s32.totalorder %s30, 0
      %p374 = por %p372, %p373
      %p375 = scmp.ne.s32.totalorder %s367, %s369
      %p376 = scmp.eq.s32.totalorder %s35, 1
      %p377 = por %p375, %p376
      %p378 = scmp.ne.s32.totalorder %s369, %s370
      %p379 = scmp.eq.s32.totalorder %s35, 0
      %p380 = por %p378, %p379
      %p381 = scmp.ne.s32.totalorder %s369, %s370
      %p382 = scmp.eq.s32.totalorder %s36, 1
      %p383 = por %p381, %p382
      %p385 = scmp.ne.s32.totalorder %s370, %s384
      %p386 = scmp.eq.s32.totalorder %s36, 0
      %p387 = por %p385, %p386
      %s389 = sadd.s32 %s388, 1
      %p392 = scmp.eq.s32.totalorder %s30, 1
      %p393 = scmp.ne.s32.totalorder %s388, %s390
      %p394 = scmp.eq.s32.totalorder %s30, 0
      %p395 = por %p393, %p394
      %p396 = scmp.ne.s32.totalorder %s388, %s390
      %p397 = scmp.eq.s32.totalorder %s35, 1
      %p398 = por %p396, %p397
      %p399 = scmp.ne.s32.totalorder %s390, %s391
      %p400 = scmp.eq.s32.totalorder %s35, 0
      %p401 = por %p399, %p400
      %p402 = scmp.ne.s32.totalorder %s390, %s391
      %p403 = scmp.eq.s32.totalorder %s36, 1
      %p404 = por %p402, %p403
      %p406 = scmp.ne.s32.totalorder %s391, %s405
      %p407 = scmp.eq.s32.totalorder %s36, 0
      %p408 = por %p406, %p407
      %s410 = sadd.s32 %s409, 1
      %p413 = scmp.eq.s32.totalorder %s30, 1
      %p414 = scmp.ne.s32.totalorder %s409, %s411
      %p415 = scmp.eq.s32.totalorder %s30, 0
      %p416 = por %p414, %p415
      %p417 = scmp.ne.s32.totalorder %s409, %s411
      %p418 = scmp.eq.s32.totalorder %s35, 1
      %p419 = por %p417, %p418
      %p420 = scmp.ne.s32.totalorder %s411, %s412
      %p421 = scmp.eq.s32.totalorder %s35, 0
      %p422 = por %p420, %p421
      %p423 = scmp.ne.s32.totalorder %s411, %s412
      %p424 = scmp.eq.s32.totalorder %s36, 1
      %p425 = por %p423, %p424
      %p427 = scmp.ne.s32.totalorder %s412, %s426
      %p428 = scmp.eq.s32.totalorder %s36, 0
      %p429 = por %p427, %p428
      %s431 = sadd.s32 %s430, 1
      %p434 = scmp.eq.s32.totalorder %s30, 1
      %p435 = scmp.ne.s32.totalorder %s430, %s432
      %p436 = scmp.eq.s32.totalorder %s30, 0
      %p437 = por %p435, %p436
      %p438 = scmp.ne.s32.totalorder %s430, %s432
      %p439 = scmp.eq.s32.totalorder %s35, 1
      %p440 = por %p438, %p439
      %p441 = scmp.ne.s32.totalorder %s432, %s433
      %p442 = scmp.eq.s32.totalorder %s35, 0
      %p443 = por %p441, %p442
      %p444 = scmp.ne.s32.totalorder %s432, %s433
      %p445 = scmp.eq.s32.totalorder %s36, 1
      %p446 = por %p444, %p445
      %p448 = scmp.ne.s32.totalorder %s433, %s447
      %p449 = scmp.eq.s32.totalorder %s36, 0
      %p450 = por %p448, %p449
      %s452 = sadd.s32 %s451, 1
      %p455 = scmp.eq.s32.totalorder %s30, 1
      %p456 = scmp.ne.s32.totalorder %s451, %s453
      %p457 = scmp.eq.s32.totalorder %s30, 0
      %p458 = por %p456, %p457
      %p459 = scmp.ne.s32.totalorder %s451, %s453
      %p460 = scmp.eq.s32.totalorder %s35, 1
      %p461 = por %p459, %p460
      %p462 = scmp.ne.s32.totalorder %s453, %s454
      %p463 = scmp.eq.s32.totalorder %s35, 0
      %p464 = por %p462, %p463
      %p465 = scmp.ne.s32.totalorder %s453, %s454
      %p466 = scmp.eq.s32.totalorder %s36, 1
      %p467 = por %p465, %p466
      %p469 = scmp.ne.s32.totalorder %s454, %s468
      %p470 = scmp.eq.s32.totalorder %s36, 0
      %p471 = por %p469, %p470
      %s472 = ssub.s32 %s30, %s37
      %p473 = scmp.eq.s32.totalorder %s472, 0
      %s475 = sadd.s32 %s474, 1
      %s476 = scalar_select %p473, %s474, %s475
      %p479 = pneg %p473
      %p480 = scmp.eq.s32.totalorder %s30, 1
      %p481 = por %p479, %p480
      %p482 = scmp.ne.s32.totalorder %s474, %s477
      %p483 = scmp.eq.s32.totalorder %s30, 0
      %p484 = por %p482, %p483
      %p485 = scmp.ne.s32.totalorder %s474, %s477
      %p486 = scmp.eq.s32.totalorder %s35, 1
      %p487 = por %p485, %p486
      %p488 = scmp.ne.s32.totalorder %s477, %s478
      %p489 = scmp.eq.s32.totalorder %s35, 0
      %p490 = por %p488, %p489
      %p491 = scmp.ne.s32.totalorder %s477, %s478
      %p492 = scmp.eq.s32.totalorder %s36, 1
      %p493 = por %p491, %p492
      %p495 = scmp.ne.s32.totalorder %s478, %s494
      %p496 = scmp.eq.s32.totalorder %s36, 0
      %p497 = por %p495, %p496
      %s498 = ssub.s32 %s30, %s37
      %p499 = scmp.eq.s32.totalorder %s498, 0
      %s501 = sadd.s32 %s500, 1
      %s502 = scalar_select %p499, %s500, %s501
      %p505 = pneg %p499
      %p506 = scmp.eq.s32.totalorder %s30, 1
      %p507 = por %p505, %p506
      %p508 = scmp.ne.s32.totalorder %s500, %s503
      %p509 = scmp.eq.s32.totalorder %s30, 0
      %p510 = por %p508, %p509
      %p511 = scmp.ne.s32.totalorder %s500, %s503
      %p512 = scmp.eq.s32.totalorder %s35, 1
      %p513 = por %p511, %p512
      %p514 = scmp.ne.s32.totalorder %s503, %s504
      %p515 = scmp.eq.s32.totalorder %s35, 0
      %p516 = por %p514, %p515
      %p517 = scmp.ne.s32.totalorder %s503, %s504
      %p518 = scmp.eq.s32.totalorder %s36, 1
      %p519 = por %p517, %p518
      %p521 = scmp.ne.s32.totalorder %s504, %s520
      %p522 = scmp.eq.s32.totalorder %s36, 0
      %p523 = por %p521, %p522
      %s524 = ssub.s32 %s30, %s37
      %p525 = scmp.eq.s32.totalorder %s524, 0
      %s527 = sadd.s32 %s526, 1
      %s528 = scalar_select %p525, %s526, %s527
      %p531 = pneg %p525
      %p532 = scmp.eq.s32.totalorder %s30, 1
      %p533 = por %p531, %p532
      %p534 = scmp.ne.s32.totalorder %s526, %s529
      %p535 = scmp.eq.s32.totalorder %s30, 0
      %p536 = por %p534, %p535
      %p537 = scmp.ne.s32.totalorder %s526, %s529
      %p538 = scmp.eq.s32.totalorder %s35, 1
      %p539 = por %p537, %p538
      %p540 = scmp.ne.s32.totalorder %s529, %s530
      %p541 = scmp.eq.s32.totalorder %s35, 0
      %p542 = por %p540, %p541
      %p543 = scmp.ne.s32.totalorder %s529, %s530
      %p544 = scmp.eq.s32.totalorder %s36, 1
      %p545 = por %p543, %p544
      %p547 = scmp.ne.s32.totalorder %s530, %s546
      %p548 = scmp.eq.s32.totalorder %s36, 0
      %p549 = por %p547, %p548
      %p550 = scmp.le.s32.totalorder 1, %s30
      %p551 = scmp.lt.s32.totalorder %s30, 3
      %p552 = pnand %p550, %p551
      %p553 = pneg %p552
      // Predicated region
      $region9: #{dmpnn_forward.1} parent=5 // pred_check
        _
      $region10: #{dmpnn_forward.1} parent=5 // pred_check_branch
        %555 = sbr.rel (%p552) target = $region12
      $region11: #{dmpnn_forward.1} parent=5 // pred_region
        %s556 = ssub.s32 %s30, 1
        // Predicated region
        $region13: #{dmpnn_forward.1} parent=11 // pred_check
          %p557 = pneg %p233
        $region14: #{dmpnn_forward.1} parent=11 // pred_check_branch
          %559 = sbr.rel (%p557) target = $region16
        $region15: #{dmpnn_forward.1} parent=11 // pred_region
          _
        $region16: #{dmpnn_forward.1} parent=11 // pred_fallthru
          _
        // Predicated region
        $region17: #{dmpnn_forward.1} parent=11 // pred_check
          %p560 = pneg %p254
        $region18: #{dmpnn_forward.1} parent=11 // pred_check_branch
          %562 = sbr.rel (%p560) target = $region20
        $region19: #{dmpnn_forward.1} parent=11 // pred_region
          _
        $region20: #{dmpnn_forward.1} parent=11 // pred_fallthru
          _
        // Predicated region
        $region21: #{dmpnn_forward.1} parent=11 // pred_check
          %p563 = pneg %p275
        $region22: #{dmpnn_forward.1} parent=11 // pred_check_branch
          %565 = sbr.rel (%p563) target = $region24
        $region23: #{dmpnn_forward.1} parent=11 // pred_region
          _
        $region24: #{dmpnn_forward.1} parent=11 // pred_fallthru
          _
        // Predicated region
        $region25: #{dmpnn_forward.1} parent=11 // pred_check
          %p566 = pneg %p296
        $region26: #{dmpnn_forward.1} parent=11 // pred_check_branch
          %568 = sbr.rel (%p566) target = $region28
        $region27: #{dmpnn_forward.1} parent=11 // pred_region
          _
        $region28: #{dmpnn_forward.1} parent=11 // pred_fallthru
          _
        // Predicated region
        $region29: #{dmpnn_forward.1} parent=11 // pred_check
          %p569 = pneg %p317
        $region30: #{dmpnn_forward.1} parent=11 // pred_check_branch
          %571 = sbr.rel (%p569) target = $region32
        $region31: #{dmpnn_forward.1} parent=11 // pred_region
          _
        $region32: #{dmpnn_forward.1} parent=11 // pred_fallthru
          _
        // Predicated region
        $region33: #{dmpnn_forward.1} parent=11 // pred_check
          %p572 = pneg %p338
        $region34: #{dmpnn_forward.1} parent=11 // pred_check_branch
          %574 = sbr.rel (%p572) target = $region36
        $region35: #{dmpnn_forward.1} parent=11 // pred_region
          _
        $region36: #{dmpnn_forward.1} parent=11 // pred_fallthru
          _
        // Predicated region
        $region37: #{dmpnn_forward.1} parent=11 // pred_check
          %p575 = pneg %p359
        $region38: #{dmpnn_forward.1} parent=11 // pred_check_branch
          %577 = sbr.rel (%p575) target = $region40
        $region39: #{dmpnn_forward.1} parent=11 // pred_region
          _
        $region40: #{dmpnn_forward.1} parent=11 // pred_fallthru
          _
        // Predicated region
        $region41: #{dmpnn_forward.1} parent=11 // pred_check
          %p578 = pneg %p380
        $region42: #{dmpnn_forward.1} parent=11 // pred_check_branch
          %580 = sbr.rel (%p578) target = $region44
        $region43: #{dmpnn_forward.1} parent=11 // pred_region
          _
        $region44: #{dmpnn_forward.1} parent=11 // pred_fallthru
          _
        // Predicated region
        $region45: #{dmpnn_forward.1} parent=11 // pred_check
          %p581 = pneg %p401
        $region46: #{dmpnn_forward.1} parent=11 // pred_check_branch
          %583 = sbr.rel (%p581) target = $region48
        $region47: #{dmpnn_forward.1} parent=11 // pred_region
          _
        $region48: #{dmpnn_forward.1} parent=11 // pred_fallthru
          _
        // Predicated region
        $region49: #{dmpnn_forward.1} parent=11 // pred_check
          %p584 = pneg %p422
        $region50: #{dmpnn_forward.1} parent=11 // pred_check_branch
          %586 = sbr.rel (%p584) target = $region52
        $region51: #{dmpnn_forward.1} parent=11 // pred_region
          _
        $region52: #{dmpnn_forward.1} parent=11 // pred_fallthru
          _
        // Predicated region
        $region53: #{dmpnn_forward.1} parent=11 // pred_check
          %p587 = pneg %p443
        $region54: #{dmpnn_forward.1} parent=11 // pred_check_branch
          %589 = sbr.rel (%p587) target = $region56
        $region55: #{dmpnn_forward.1} parent=11 // pred_region
          _
        $region56: #{dmpnn_forward.1} parent=11 // pred_fallthru
          _
        // Predicated region
        $region57: #{dmpnn_forward.1} parent=11 // pred_check
          %p590 = pneg %p464
        $region58: #{dmpnn_forward.1} parent=11 // pred_check_branch
          %592 = sbr.rel (%p590) target = $region60
        $region59: #{dmpnn_forward.1} parent=11 // pred_region
          _
        $region60: #{dmpnn_forward.1} parent=11 // pred_fallthru
          _
      $region12: #{dmpnn_forward.1} parent=5 // pred_fallthru
        _
      %p593 = scmp.lt.s32.totalorder %s30, 2
      // Predicated region
      $region61: #{dmpnn_forward.1} parent=5 // pred_check
        %p594 = pneg %p593
      $region62: #{dmpnn_forward.1} parent=5 // pred_check_branch
        %596 = sbr.rel (%p594) target = $region64
      $region63: #{dmpnn_forward.1} parent=5 // pred_region
        // Predicated region
        $region65: #{dmpnn_forward.1} parent=63 // pred_check
          %p597 = pneg %p50
        $region66: #{dmpnn_forward.1} parent=63 // pred_check_branch
          %599 = sbr.rel (%p597) target = $region68
        $region67: #{dmpnn_forward.1} parent=63 // pred_region
          %s600 = smul.u32 16, %s30
          %p601 = scmp.lt.s32.totalorder %s600, 31
          %s602 = scalar_select %p601, %s600, 31
          %s603 = smul.addr %s602, 8
          %s604 = scalar_lea.vmem %s0, %s603
          %s605 = smul.u32 16, %s30
        $region68: #{dmpnn_forward.1} parent=63 // pred_fallthru
          _
        // Predicated region
        $region69: #{dmpnn_forward.1} parent=63 // pred_check
          %p606 = pneg %p76
        $region70: #{dmpnn_forward.1} parent=63 // pred_check_branch
          %608 = sbr.rel (%p606) target = $region72
        $region71: #{dmpnn_forward.1} parent=63 // pred_region
          %p609 = scmp.lt.s32.totalorder %s30, 1
          %s610 = scalar_select %p609, %s30, 1
          %s611 = smul.addr %s610, 8
          %s612 = scalar_lea.vmem %s1, %s611
        $region72: #{dmpnn_forward.1} parent=63 // pred_fallthru
          _
        // Predicated region
        $region73: #{dmpnn_forward.1} parent=63 // pred_check
          %p613 = pneg %p102
        $region74: #{dmpnn_forward.1} parent=63 // pred_check_branch
          %615 = sbr.rel (%p613) target = $region76
        $region75: #{dmpnn_forward.1} parent=63 // pred_region
          %s616 = sand.u32 %s92, 1
          %s617 = sand.u32 %s92, 1
          %s618 = smul.addr %s617, 32
          %s619 = scalar_lea.vmem [#allocation3], %s618
          %s620 = smul.u32 2, %s30
          %s621 = smul.addr %s620, 8
          %s622 = scalar_lea.vmem %s2, %s621
          // Predicated region
          $region77: #{dmpnn_forward.1} parent=75 // pred_check
            _
          $region78: #{dmpnn_forward.1} parent=75 // pred_check_branch
            %624 = sbr.rel (0) target = $region80
          $region79: #{dmpnn_forward.1} parent=75 // pred_region
            // Predicated region
            $region81: #{dmpnn_forward.1} parent=79 // pred_check
              _
            $region82: #{dmpnn_forward.1} parent=79 // pred_check_branch
              %626 = sbr.rel (0) target = $region84
            $region83: #{dmpnn_forward.1} parent=79 // pred_region
              loop: start=0, step=1, limit=1
              $region85: #{dmpnn_forward.1} parent=83 // loop_pre_header
                _
              $region86: #{dmpnn_forward.1} parent=83 // loop_header
                %s628 = sphi 0, %s632
                %p629 = scmp.ge.s32.totalorder %s628, 1
                %s633 = sphi %s622, %s622
                %s634 = sphi %s619, %s619
              $region87: #{dmpnn_forward.1} parent=83 // loop_header_branch
                %631 = sbr.rel (%p629) target = $region91
              $region88: #{dmpnn_forward.1} parent=83 // loop_body
                %v635 = vld [vmem:[%s633] sm:$0xff]
                %636 = vst [vmem:[%s634] sm:$0xff] %v635
                %v637 = vld [vmem:[%s633 + $0x8] sm:$0xff]
                %638 = vst [vmem:[%s634 + $0x8] sm:$0xff] %v637
                %v639 = vld [vmem:[%s633 + $0x20] sm:$0xff]
                %640 = vst [vmem:[%s634 + $0x10] sm:$0xff] %v639
                %v641 = vld [vmem:[%s633 + $0x28] sm:$0xff]
                %642 = vst [vmem:[%s634 + $0x18] sm:$0xff] %v641
              $region89: #{dmpnn_forward.1} parent=83 // loop_footer
                %s632 = sadd.s32 1, %s628
              $region90: #{dmpnn_forward.1} parent=83 // loop_footer_branch
                %627 = sbr.rel target = $region86
              $region91: #{dmpnn_forward.1} parent=83 // loop_exit
                _
            $region84: #{dmpnn_forward.1} parent=79 // pred_fallthru
              _
            // Predicated region
            $region92: #{dmpnn_forward.1} parent=79 // pred_check
              _
            $region93: #{dmpnn_forward.1} parent=79 // pred_check_branch
              %644 = sbr.rel target = $region95
            $region94: #{dmpnn_forward.1} parent=79 // pred_region
              _
            $region95: #{dmpnn_forward.1} parent=79 // pred_fallthru
              _
          $region80: #{dmpnn_forward.1} parent=75 // pred_fallthru
            _
          %645 = vnop
        $region76: #{dmpnn_forward.1} parent=63 // pred_fallthru
          _
        // Predicated region
        $region96: #{dmpnn_forward.1} parent=63 // pred_check
          %p646 = pneg %p128
        $region97: #{dmpnn_forward.1} parent=63 // pred_check_branch
          %648 = sbr.rel (%p646) target = $region99
        $region98: #{dmpnn_forward.1} parent=63 // pred_region
          %p649 = scmp.lt.s32.totalorder %s30, 1
          %s650 = scalar_select %p649, %s30, 1
          %s651 = smul.addr %s650, 4
          %s652 = scalar_lea.vmem %s3, %s651
        $region99: #{dmpnn_forward.1} parent=63 // pred_fallthru
          _
        // Predicated region
        $region100: #{dmpnn_forward.1} parent=63 // pred_check
          %p653 = pneg %p154
        $region101: #{dmpnn_forward.1} parent=63 // pred_check_branch
          %655 = sbr.rel (%p653) target = $region103
        $region102: #{dmpnn_forward.1} parent=63 // pred_region
          %p656 = scmp.lt.s32.totalorder %s30, 1
          %s657 = scalar_select %p656, %s30, 1
          %s658 = smul.addr %s657, 2
          %s659 = scalar_lea.vmem %s4, %s658
        $region103: #{dmpnn_forward.1} parent=63 // pred_fallthru
          _
        // Predicated region
        $region104: #{dmpnn_forward.1} parent=63 // pred_check
          %p660 = pneg %p180
        $region105: #{dmpnn_forward.1} parent=63 // pred_check_branch
          %662 = sbr.rel (%p660) target = $region107
        $region106: #{dmpnn_forward.1} parent=63 // pred_region
          %p663 = scmp.lt.s32.totalorder %s30, 1
          %s664 = scalar_select %p663, %s30, 1
          %s665 = smul.addr %s664, 2
          %s666 = scalar_lea.vmem %s5, %s665
        $region107: #{dmpnn_forward.1} parent=63 // pred_fallthru
          _
        // Predicated region
        $region108: #{dmpnn_forward.1} parent=63 // pred_check
          %p667 = pneg %p206
        $region109: #{dmpnn_forward.1} parent=63 // pred_check_branch
          %669 = sbr.rel (%p667) target = $region111
        $region110: #{dmpnn_forward.1} parent=63 // pred_region
          %p670 = scmp.lt.s32.totalorder %s30, 1
          %s671 = scalar_select %p670, %s30, 1
          %s672 = smul.addr %s671, 8
          %s673 = scalar_lea.vmem %s6, %s672
        $region111: #{dmpnn_forward.1} parent=63 // pred_fallthru
          _
      $region64: #{dmpnn_forward.1} parent=5 // pred_fallthru
        _
      %p674 = scmp.le.s32.totalorder 1, %s30
      %p675 = scmp.lt.s32.totalorder %s30, 3
      %p676 = pnand %p674, %p675
      %p677 = pneg %p676
      // Predicated region
      $region112: #{dmpnn_forward.1} parent=5 // pred_check
        _
      $region113: #{dmpnn_forward.1} parent=5 // pred_check_branch
        %679 = sbr.rel (%p676) target = $region115
      $region114: #{dmpnn_forward.1} parent=5 // pred_region
        %s680 = ssub.s32 %s30, 1
        %s681 = sand.u32 %s95, 1
        %s682 = sand.u32 %s95, 1
        %s683 = smul.addr %s682, 32
        %s684 = scalar_lea.vmem [#allocation3], %s683
        // Predicated region
        $region116: #{dmpnn_forward.1} parent=114 // pred_check
          %p685 = pneg %p108
        $region117: #{dmpnn_forward.1} parent=114 // pred_check_branch
          %687 = sbr.rel (%p685) target = $region119
        $region118: #{dmpnn_forward.1} parent=114 // pred_region
          _
        $region119: #{dmpnn_forward.1} parent=114 // pred_fallthru
          _
        %s688 = smul.u32 16, %s35
        %p689 = scmp.lt.s32.totalorder %s688, 31
        %s690 = scalar_select %p689, %s688, 31
        %s691 = smul.addr %s690, 8
        %s692 = scalar_lea.vmem %s0, %s691
        %p693 = pneg %p56
        %p694 = pneg %p53
        %p695 = scmp.lt.s32.totalorder %s35, 1
        %s696 = scalar_select %p695, %s35, 1
        %s697 = smul.addr %s696, 8
        %s698 = scalar_lea.vmem %s1, %s697
        %p699 = pneg %p82
        %p700 = pneg %p79
        %s701 = sand.u32 %s95, 1
        %s702 = sand.u32 %s95, 1
        %s703 = smul.addr %s702, 32
        %s704 = scalar_lea.vmem [#allocation3], %s703
        %p705 = pneg %p108
        %p706 = pneg %p105
        %p707 = scmp.lt.s32.totalorder %s35, 1
        %s708 = scalar_select %p707, %s35, 1
        %s709 = smul.addr %s708, 4
        %s710 = scalar_lea.vmem %s3, %s709
        %p711 = pneg %p134
        %p712 = pneg %p131
        %p713 = scmp.lt.s32.totalorder %s35, 1
        %s714 = scalar_select %p713, %s35, 1
        %s715 = smul.addr %s714, 2
        %s716 = scalar_lea.vmem %s4, %s715
        %p717 = pneg %p160
        %p718 = pneg %p157
        %p719 = scmp.lt.s32.totalorder %s35, 1
        %s720 = scalar_select %p719, %s35, 1
        %s721 = smul.addr %s720, 2
        %s722 = scalar_lea.vmem %s5, %s721
        %p723 = pneg %p186
        %p724 = pneg %p183
        %p725 = scmp.lt.s32.totalorder %s35, 1
        %s726 = scalar_select %p725, %s35, 1
        %s727 = smul.addr %s726, 8
        %s728 = scalar_lea.vmem %s6, %s727
        %p729 = pneg %p212
        %p730 = pneg %p209
        %p731 = pneg %p233
        %p732 = pneg %p230
        %p733 = pneg %p254
        %p734 = pneg %p251
        %p735 = pneg %p275
        %p736 = pneg %p272
        %p737 = pneg %p296
        %p738 = pneg %p293
        %p739 = pneg %p317
        %p740 = pneg %p314
        %p741 = pneg %p338
        %p742 = pneg %p335
        %p743 = pneg %p359
        %p744 = pneg %p356
        %p745 = pneg %p380
        %p746 = pneg %p377
        %p747 = pneg %p401
        %p748 = pneg %p398
        %p749 = pneg %p422
        %p750 = pneg %p419
        %p751 = pneg %p443
        %p752 = pneg %p440
        %p753 = pneg %p464
        %p754 = pneg %p461
        %p755 = pneg %p490
        %p756 = pneg %p487
        %p757 = scmp.lt.s32.totalorder %s35, 1
        %s758 = scalar_select %p757, %s35, 1
        %s759 = smul.addr %s758, 8
        %s760 = scalar_lea.vmem %s19, %s759
        %p761 = pneg %p516
        %p762 = pneg %p513
        %p763 = scmp.lt.s32.totalorder %s35, 1
        %s764 = scalar_select %p763, %s35, 1
        %s765 = smul.addr %s764, 2
        %s766 = scalar_lea.vmem %s20, %s765
        %p767 = pneg %p542
        %p768 = pneg %p539
        %s769 = sand.u32 %s529, 1
        %s770 = sand.u32 %s529, 1
        %s771 = smul.addr %s770, 32
        %s772 = scalar_lea.vmem [#allocation4], %s771
        %s773 = smul.u32 16, %s35
        %p774 = scmp.lt.s32.totalorder %s773, 31
        %s775 = scalar_select %p774, %s773, 31
        %s776 = smul.addr %s775, 8
        %s777 = scalar_lea.vmem %s0, %s776
        %s778 = smul.u32 16, %s35
        %p779 = scmp.lt.s32.totalorder %s35, 1
        %s780 = scalar_select %p779, %s35, 1
        %s781 = smul.addr %s780, 8
        %s782 = scalar_lea.vmem %s1, %s781
        %s783 = smul.u32 2, %s35
        %p784 = scmp.lt.s32.totalorder %s35, 1
        %s785 = scalar_select %p784, %s35, 1
        %s786 = smul.addr %s785, 4
        %s787 = scalar_lea.vmem %s3, %s786
        %p788 = scmp.lt.s32.totalorder %s35, 1
        %s789 = scalar_select %p788, %s35, 1
        %s790 = smul.addr %s789, 2
        %s791 = scalar_lea.vmem %s4, %s790
        %p792 = scmp.lt.s32.totalorder %s35, 1
        %s793 = scalar_select %p792, %s35, 1
        %s794 = smul.addr %s793, 2
        %s795 = scalar_lea.vmem %s5, %s794
        %p796 = scmp.lt.s32.totalorder %s35, 1
        %s797 = scalar_select %p796, %s35, 1
        %s798 = smul.addr %s797, 8
        %s799 = scalar_lea.vmem %s6, %s798
        %p800 = scmp.lt.s32.totalorder %s35, 1
        %s801 = scalar_select %p800, %s35, 1
        %s802 = smul.addr %s801, 8
        %s803 = scalar_lea.vmem %s19, %s802
        %p804 = scmp.lt.s32.totalorder %s35, 1
        %s805 = scalar_select %p804, %s35, 1
        %s806 = smul.addr %s805, 2
        %s807 = scalar_lea.vmem %s20, %s806
        %s808 = smul.u32 2, %s35
        %v809 = vld [vmem:[%s777] sm:$0xff]
        %v810 = vld [vmem:[%s777 + $0x8] sm:$0xff]
        %v811 = vld [vmem:[%s777 + $0x10] sm:$0xff]
        %v812 = vld [vmem:[%s777 + $0x18] sm:$0xff]
        %v813 = vld [vmem:[%s777 + $0x20] sm:$0xff]
        %v814 = vld [vmem:[%s777 + $0x28] sm:$0xff]
        %v815 = vld [vmem:[%s777 + $0x30] sm:$0xff]
        %v816 = vld [vmem:[%s777 + $0x38] sm:$0xff]
        %v817 = vld [vmem:[%s777 + $0x40] sm:$0xff]
        %v818 = vld [vmem:[%s777 + $0x48] sm:$0xff]
        %v819 = vld [vmem:[%s777 + $0x50] sm:$0xff]
        %v820 = vld [vmem:[%s777 + $0x58] sm:$0xff]
        %v821 = vld [vmem:[%s777 + $0x60] sm:$0xff]
        %v822 = vld [vmem:[%s777 + $0x68] sm:$0xff]
        %v823 = vld [vmem:[%s777 + $0x70] sm:$0xff]
        %v824 = vld [vmem:[%s777 + $0x78] sm:$0xff]
        %v825 = vld [vmem:[%s7] sm:$0xff]
        %v826 = vld [vmem:[%s7 + $0x8] sm:$0xff]
        %v827 = vld [vmem:[%s7 + $0x10] sm:$0xff]
        %v828 = vld [vmem:[%s7 + $0x18] sm:$0xff]
        %v829 = vld [vmem:[%s7 + $0x20] sm:$0xff]
        %v830 = vld [vmem:[%s7 + $0x28] sm:$0xff]
        %v831 = vld [vmem:[%s7 + $0x30] sm:$0xff]
        %v832 = vld [vmem:[%s7 + $0x38] sm:$0xff]
        %v833 = vld [vmem:[%s7 + $0x40] sm:$0x3f]
        %v834 = vld [vmem:[%s8] sm:$0x1]
        %v836 = vlaneseq
        %v837 = vshrl.u32 %v836, 7
        %v838 = vsub.s32 0, %v837
        %v839 = vrot.slane %v834, %v838
        %vm841 = vcmask 572416
        %v843 = vsel %vm841, %v809, 0
        %v846 = vsel %vm841, %v810, 0
        %v849 = vsel %vm841, %v811, 0
        %v852 = vsel %vm841, %v812, 0
        %v855 = vsel %vm841, %v813, 0
        %v858 = vsel %vm841, %v814, 0
        %v861 = vsel %vm841, %v815, 0
        %v864 = vsel %vm841, %v816, 0
        %v867 = vsel %vm841, %v817, 0
        %v870 = vsel %vm841, %v818, 0
        %v873 = vsel %vm841, %v819, 0
        %v876 = vsel %vm841, %v820, 0
        %v879 = vsel %vm841, %v821, 0
        %v882 = vsel %vm841, %v822, 0
        %v885 = vsel %vm841, %v823, 0
        %v888 = vsel %vm841, %v824, 0
        %vm890 = vcmask 1045504
        %v892 = vsel %vm890, %v833, 0
        %894 = vmatprep.subr.mxu0 0.0
        %895 = vmatpush1.msra.mxu0 %v825
        %896 = vmatprep.subr.mxu0 0.0
        %897 = vmatpush1.msra.mxu0 %v826
        %898 = vmatprep.subr.mxu0 0.0
        %899 = vmatpush1.msra.mxu0 %v827
        %900 = vmatprep.subr.mxu0 0.0
        %901 = vmatpush1.msra.mxu0 %v828
        %902 = vmatprep.subr.mxu0 0.0
        %903 = vmatpush1.msra.mxu0 %v829
        %904 = vmatprep.subr.mxu0 0.0
        %905 = vmatpush1.msra.mxu0 %v830
        %906 = vmatprep.subr.mxu0 0.0
        %907 = vmatpush1.msra.mxu0 %v831
        %908 = vmatprep.subr.mxu0 0.0
        %909 = vmatpush1.msra.mxu0 %v832
        %910 = vmatprep.subr.mxu0 0.0
        %911 = vmatpush1.msra.mxu0 %v892
        %912 = vmatprep.subr.mxu0 0.0
        %913 = vmatpush1.msra.mxu0 0.0
        %914 = vmatprep.subr.mxu0 0.0
        %915 = vmatpush1.msra.mxu0 0.0
        %916 = vmatprep.subr.mxu0 0.0
        %917 = vmatpush1.msra.mxu0 0.0
        %918 = vmatprep.subr.mxu0 0.0
        %919 = vmatpush1.msra.mxu0 0.0
        %920 = vmatprep.subr.mxu0 0.0
        %921 = vmatpush1.msra.mxu0 0.0
        %922 = vmatprep.subr.mxu0 0.0
        %923 = vmatpush1.msra.mxu0 0.0
        %924 = vmatprep.subr.mxu0 0.0
        %925 = vmatpush1.msra.mxu0 0.0
        %926 = vmatprep.subr.mxu0 0.0
        %927 = vmatpush1.msra.mxu0 0.0
        %928 = vmatprep.subr.mxu0 0.0
        %929 = vmatpush1.msra.mxu0 0.0
        %930 = vmatprep.subr.mxu0 0.0
        %931 = vmatpush1.msra.mxu0 0.0
        %932 = vmatprep.subr.mxu0 0.0
        %933 = vmatpush1.msra.mxu0 0.0
        %934 = vmatprep.subr.mxu0 0.0
        %935 = vmatpush1.msra.mxu0 0.0
        %936 = vmatprep.subr.mxu0 0.0
        %937 = vmatpush1.msra.mxu0 0.0
        %938 = vmatprep.subr.mxu0 0.0
        %939 = vmatpush1.msra.mxu0 0.0
        %940 = vmatprep.subr.mxu0 0.0
        %941 = vmatpush1.msra.mxu0 0.0
        %942 = vmatprep.subr.mxu0 0.0
        %943 = vmatpush1.msra.mxu0 0.0
        %944 = vmatprep.subr.mxu0 0.0
        %945 = vmatpush1.msra.mxu0 0.0
        %946 = vmatprep.subr.mxu0 0.0
        %947 = vmatpush1.msra.mxu0 0.0
        %948 = vmatprep.subr.mxu0 0.0
        %949 = vmatpush1.msra.mxu0 0.0
        %950 = vmatprep.subr.mxu0 0.0
        %951 = vmatpush1.msra.mxu0 0.0
        %952 = vmatprep.subr.mxu0 0.0
        %953 = vmatpush1.msra.mxu0 0.0
        %954 = vmatprep.subr.mxu0 0.0
        %955 = vmatpush1.msra.mxu0 0.0
        %956 = vmatprep.subr.mxu0 0.0
        %957 = vmatpush1.msra.mxu0 0.0
        %958 = vmatprep.mubr.f32.mxu0 0.0
        %959 = vmatmul.mubr.f32.gmra.mrb[0].mxu0 %v843
        %v960 = vpop.f32.mrb[0].mxu0
        %v961 = vadd.f32 %v839, %v960
        %v962 = vpop.f32.mrb[0].mxu0
        %963 = vmatprep.mubr.f32.mxu0 0.0
        %964 = vmatmul.mubr.f32.gmra.mrb[0].mxu0 %v846
        %v965 = vpop.f32.mrb[0].mxu0
        %v966 = vadd.f32 %v839, %v965
        %v967 = vpop.f32.mrb[0].mxu0
        %968 = vmatprep.mubr.f32.mxu0 0.0
        %969 = vmatmul.mubr.f32.gmra.mrb[0].mxu0 %v849
        %v970 = vpop.f32.mrb[0].mxu0
        %v971 = vadd.f32 %v839, %v970
        %v972 = vpop.f32.mrb[0].mxu0
        %973 = vmatprep.mubr.f32.mxu0 0.0
        %974 = vmatmul.mubr.f32.gmra.mrb[0].mxu0 %v852
        %v975 = vpop.f32.mrb[0].mxu0
        %v976 = vadd.f32 %v839, %v975
        %v977 = vpop.f32.mrb[0].mxu0
        %978 = vmatprep.mubr.f32.mxu0 0.0
        %979 = vmatmul.mubr.f32.gmra.mrb[0].mxu0 %v855
        %v980 = vpop.f32.mrb[0].mxu0
        %v981 = vadd.f32 %v839, %v980
        %v982 = vpop.f32.mrb[0].mxu0
        %983 = vmatprep.mubr.f32.mxu0 0.0
        %984 = vmatmul.mubr.f32.gmra.mrb[0].mxu0 %v858
        %v985 = vpop.f32.mrb[0].mxu0
        %v986 = vadd.f32 %v839, %v985
        %v987 = vpop.f32.mrb[0].mxu0
        %988 = vmatprep.mubr.f32.mxu0 0.0
        %989 = vmatmul.mubr.f32.gmra.mrb[0].mxu0 %v861
        %v990 = vpop.f32.mrb[0].mxu0
        %v991 = vadd.f32 %v839, %v990
        %v992 = vpop.f32.mrb[0].mxu0
        %993 = vmatprep.mubr.f32.mxu0 0.0
        %994 = vmatmul.mubr.f32.gmra.mrb[0].mxu0 %v864
        %v995 = vpop.f32.mrb[0].mxu0
        %v996 = vadd.f32 %v839, %v995
        %v997 = vpop.f32.mrb[0].mxu0
        %998 = vmatprep.mubr.f32.mxu0 0.0
        %999 = vmatmul.mubr.f32.gmra.mrb[0].mxu0 %v867
        %v1000 = vpop.f32.mrb[0].mxu0
        %v1001 = vadd.f32 %v839, %v1000
        %v1002 = vpop.f32.mrb[0].mxu0
        %1003 = vmatprep.mubr.f32.mxu0 0.0
        %1004 = vmatmul.mubr.f32.gmra.mrb[0].mxu0 %v870
        %v1005 = vpop.f32.mrb[0].mxu0
        %v1006 = vadd.f32 %v839, %v1005
        %v1007 = vpop.f32.mrb[0].mxu0
        %1008 = vmatprep.mubr.f32.mxu0 0.0
        %1009 = vmatmul.mubr.f32.gmra.mrb[0].mxu0 %v873
        %v1010 = vpop.f32.mrb[0].mxu0
        %v1011 = vadd.f32 %v839, %v1010
        %v1012 = vpop.f32.mrb[0].mxu0
        %1013 = vmatprep.mubr.f32.mxu0 0.0
        %1014 = vmatmul.mubr.f32.gmra.mrb[0].mxu0 %v876
        %v1015 = vpop.f32.mrb[0].mxu0
        %v1016 = vadd.f32 %v839, %v1015
        %v1017 = vpop.f32.mrb[0].mxu0
        %1018 = vmatprep.mubr.f32.mxu0 0.0
        %1019 = vmatmul.mubr.f32.gmra.mrb[0].mxu0 %v879
        %v1020 = vpop.f32.mrb[0].mxu0
        %v1021 = vadd.f32 %v839, %v1020
        %v1022 = vpop.f32.mrb[0].mxu0
        %1023 = vmatprep.mubr.f32.mxu0 0.0
        %1024 = vmatmul.mubr.f32.gmra.mrb[0].mxu0 %v882
        %v1025 = vpop.f32.mrb[0].mxu0
        %v1026 = vadd.f32 %v839, %v1025
        %v1027 = vpop.f32.mrb[0].mxu0
        %1028 = vmatprep.mubr.f32.mxu0 0.0
        %1029 = vmatmul.mubr.f32.gmra.mrb[0].mxu0 %v885
        %v1030 = vpop.f32.mrb[0].mxu0
        %v1031 = vadd.f32 %v839, %v1030
        %v1032 = vpop.f32.mrb[0].mxu0
        %1033 = vmatprep.mubr.f32.mxu0 0.0
        %1034 = vmatmul.mubr.f32.gmra.mrb[0].mxu0 %v888
        %v1035 = vpop.f32.mrb[0].mxu0
        %v1036 = vadd.f32 %v839, %v1035
        %v1037 = vpop.f32.mrb[0].mxu0
        %1038 = vdwg.mxu0
        %v1039 = vmax.f32 %v961, 0.0
        %v1040 = vmax.f32 %v966, 0.0
        %v1041 = vmax.f32 %v971, 0.0
        %v1042 = vmax.f32 %v976, 0.0
        %v1043 = vmax.f32 %v981, 0.0
        %v1044 = vmax.f32 %v986, 0.0
        %v1045 = vmax.f32 %v991, 0.0
        %v1046 = vmax.f32 %v996, 0.0
        %v1047 = vmax.f32 %v1001, 0.0
        %v1048 = vmax.f32 %v1006, 0.0
        %v1049 = vmax.f32 %v1011, 0.0
        %v1050 = vmax.f32 %v1016, 0.0
        %v1051 = vmax.f32 %v1021, 0.0
        %v1052 = vmax.f32 %v1026, 0.0
        %v1053 = vmax.f32 %v1031, 0.0
        %v1054 = vmax.f32 %v1036, 0.0
        %v1055 = vld [vmem:[%s9] sm:$0xff]
        %v1056 = vld [vmem:[%s9 + $0x8] sm:$0xff]
        %v1057 = vld [vmem:[%s684] sm:$0xff]
        %v1058 = vld [vmem:[%s684 + $0x8] sm:$0xff]
        %v1059 = vld [vmem:[%s684 + $0x10] sm:$0x3f]
        %v1060 = vld [vmem:[%s684 + $0x18] sm:$0x3f]
        %v1061 = vld [vmem:[%s10] sm:$0xff]
        %v1062 = vld [vmem:[%s10 + $0x8] sm:$0xff]
        %1064 = vset.pattern.permute.xlu0 0
        %1065 = vperm.xlu0 %1064, %v1061
        %v1066 = vpop.permute.xlu0 %1065
        %1069 = vset.pattern.permute.xlu0 0
        %1070 = vperm.xlu0 %1069, %v1062
        %v1071 = vpop.permute.xlu0 %1070
        %vm1073 = vcmask 113664
        %v1075 = vsel %vm1073, %v1055, 0
        %v1078 = vsel %vm1073, %v1056, 0
        %v1081 = vsel %vm890, %v1059, 0
        %v1084 = vsel %vm890, %v1060, 0
        %1086 = vmatprep.subr.mxu0 %v1058
        %1087 = vmatpush1.msra.mxu0 %v1057
        %1088 = vmatprep.subr.mxu0 %v1084
        %1089 = vmatpush1.msra.mxu0 %v1081
        %1090 = vmatprep.subr.mxu0 0.0
        %1091 = vmatpush1.msra.mxu0 0.0
        %1092 = vmatprep.subr.mxu0 0.0
        %1093 = vmatpush1.msra.mxu0 0.0
        %1094 = vmatprep.subr.mxu0 0.0
        %1095 = vmatpush1.msra.mxu0 0.0
        %1096 = vmatprep.subr.mxu0 0.0
        %1097 = vmatpush1.msra.mxu0 0.0
        %1098 = vmatprep.subr.mxu0 0.0
        %1099 = vmatpush1.msra.mxu0 0.0
        %1100 = vmatprep.subr.mxu0 0.0
        %1101 = vmatpush1.msra.mxu0 0.0
        %1102 = vmatprep.subr.mxu0 0.0
        %1103 = vmatpush1.msra.mxu0 0.0
        %1104 = vmatprep.subr.mxu0 0.0
        %1105 = vmatpush1.msra.mxu0 0.0
        %1106 = vmatprep.subr.mxu0 0.0
        %1107 = vmatpush1.msra.mxu0 0.0
        %1108 = vmatprep.subr.mxu0 0.0
        %1109 = vmatpush1.msra.mxu0 0.0
        %1110 = vmatprep.subr.mxu0 0.0
        %1111 = vmatpush1.msra.mxu0 0.0
        %1112 = vmatprep.subr.mxu0 0.0
        %1113 = vmatpush1.msra.mxu0 0.0
        %1114 = vmatprep.subr.mxu0 0.0
        %1115 = vmatpush1.msra.mxu0 0.0
        %1116 = vmatprep.subr.mxu0 0.0
        %1117 = vmatpush1.msra.mxu0 0.0
        %1118 = vmatprep.subr.mxu0 0.0
        %1119 = vmatpush1.msra.mxu0 0.0
        %1120 = vmatprep.subr.mxu0 0.0
        %1121 = vmatpush1.msra.mxu0 0.0
        %1122 = vmatprep.subr.mxu0 0.0
        %1123 = vmatpush1.msra.mxu0 0.0
        %1124 = vmatprep.subr.mxu0 0.0
        %1125 = vmatpush1.msra.mxu0 0.0
        %1126 = vmatprep.subr.mxu0 0.0
        %1127 = vmatpush1.msra.mxu0 0.0
        %1128 = vmatprep.subr.mxu0 0.0
        %1129 = vmatpush1.msra.mxu0 0.0
        %1130 = vmatprep.subr.mxu0 0.0
        %1131 = vmatpush1.msra.mxu0 0.0
        %1132 = vmatprep.subr.mxu0 0.0
        %1133 = vmatpush1.msra.mxu0 0.0
        %1134 = vmatprep.subr.mxu0 0.0
        %1135 = vmatpush1.msra.mxu0 0.0
        %1136 = vmatprep.subr.mxu0 0.0
        %1137 = vmatpush1.msra.mxu0 0.0
        %1138 = vmatprep.subr.mxu0 0.0
        %1139 = vmatpush1.msra.mxu0 0.0
        %1140 = vmatprep.subr.mxu0 0.0
        %1141 = vmatpush1.msra.mxu0 0.0
        %1142 = vmatprep.subr.mxu0 0.0
        %1143 = vmatpush1.msra.mxu0 0.0
        %1144 = vmatprep.subr.mxu0 0.0
        %1145 = vmatpush1.msra.mxu0 0.0
        %1146 = vmatprep.subr.mxu0 0.0
        %1147 = vmatpush1.msra.mxu0 0.0
        %1148 = vmatprep.subr.mxu0 0.0
        %1149 = vmatpush1.msra.mxu0 0.0
        %1150 = vmatprep.mubr.f32.mxu0 0.0
        %1151 = vmatmul.mubr.f32.gmra.mrb[0].mxu0 %v1075
        %v1152 = vpop.f32.mrb[0].mxu0
        %v1153 = vadd.f32 %v1066, %v1152
        %v1154 = vpop.f32.mrb[0].mxu0
        %v1155 = vadd.f32 %v1066, %v1154
        %1156 = vmatprep.mubr.f32.mxu0 0.0
        %1157 = vmatmul.mubr.f32.gmra.mrb[0].mxu0 %v1078
        %v1158 = vpop.f32.mrb[0].mxu0
        %v1159 = vadd.f32 %v1071, %v1158
        %v1160 = vpop.f32.mrb[0].mxu0
        %v1161 = vadd.f32 %v1071, %v1160
        %1162 = vdwg.mxu0
        %v1163 = vmax.f32 %v1153, 0.0
        %v1164 = vmax.f32 %v1155, 0.0
        %v1165 = vmax.f32 %v1159, 0.0
        %v1166 = vmax.f32 %v1161, 0.0
        %1167 = vst [vmem:[%s772] sm:$0xff] %v1163
        %1168 = vst [vmem:[%s772 + $0x8] sm:$0xff] %v1164
        %1169 = vst [vmem:[%s772 + $0x10] sm:$0xff] %v1165
        %1170 = vst [vmem:[%s772 + $0x18] sm:$0xff] %v1166
        %v1171 = vlaneseq
        %v1172 = vshrl.u32 %v1171, 7
        %v1173 = vadd.s32 %v1172, 8
        %v1174 = vadd.s32 %v1172, 16
        %v1175 = vadd.s32 %v1172, 24
        %v1176 = vadd.s32 %v1172, 32
        %v1177 = vadd.s32 %v1172, 40
        %v1178 = vadd.s32 %v1172, 48
        %v1179 = vadd.s32 %v1172, 56
        %v1180 = vadd.s32 %v1172, 64
        %v1181 = vadd.s32 %v1172, 72
        %v1182 = vadd.s32 %v1172, 80
        %v1183 = vadd.s32 %v1172, 88
        %v1184 = vadd.s32 %v1172, 96
        %v1185 = vadd.s32 %v1172, 104
        %v1186 = vadd.s32 %v1172, 112
        %v1187 = vadd.s32 %v1172, 120
        %v1188 = vld [vmem:[%s791] sm:$0x3]
        %v1189 = vlaneseq
        %v1190 = vshrl.u32 %v1189, 7
        %v1191 = vsub.s32 0, %v1190
        %v1192 = vrot.slane %v1188, %v1191
        %v1193 = vlaneseq
        %v1194 = vshrl.u32 %v1193, 7
        %v1195 = vsub.s32 1, %v1194
        %v1196 = vrot.slane %v1188, %v1195
        %vm1197 = vcmp.eq.s32.totalorder %v1172, %v1192
        %vm1198 = vcmp.eq.s32.totalorder %v1172, %v1196
        %vm1199 = vcmp.eq.s32.totalorder %v1173, %v1192
        %vm1200 = vcmp.eq.s32.totalorder %v1173, %v1196
        %vm1201 = vcmp.eq.s32.totalorder %v1174, %v1192
        %vm1202 = vcmp.eq.s32.totalorder %v1174, %v1196
        %vm1203 = vcmp.eq.s32.totalorder %v1175, %v1192
        %vm1204 = vcmp.eq.s32.totalorder %v1175, %v1196
        %vm1205 = vcmp.eq.s32.totalorder %v1176, %v1192
        %vm1206 = vcmp.eq.s32.totalorder %v1176, %v1196
        %vm1207 = vcmp.eq.s32.totalorder %v1177, %v1192
        %vm1208 = vcmp.eq.s32.totalorder %v1177, %v1196
        %vm1209 = vcmp.eq.s32.totalorder %v1178, %v1192
        %vm1210 = vcmp.eq.s32.totalorder %v1178, %v1196
        %vm1211 = vcmp.eq.s32.totalorder %v1179, %v1192
        %vm1212 = vcmp.eq.s32.totalorder %v1179, %v1196
        %vm1213 = vcmp.eq.s32.totalorder %v1180, %v1192
        %vm1214 = vcmp.eq.s32.totalorder %v1180, %v1196
        %vm1215 = vcmp.eq.s32.totalorder %v1181, %v1192
        %vm1216 = vcmp.eq.s32.totalorder %v1181, %v1196
        %vm1217 = vcmp.eq.s32.totalorder %v1182, %v1192
        %vm1218 = vcmp.eq.s32.totalorder %v1182, %v1196
        %vm1219 = vcmp.eq.s32.totalorder %v1183, %v1192
        %vm1220 = vcmp.eq.s32.totalorder %v1183, %v1196
        %vm1221 = vcmp.eq.s32.totalorder %v1184, %v1192
        %vm1222 = vcmp.eq.s32.totalorder %v1184, %v1196
        %vm1223 = vcmp.eq.s32.totalorder %v1185, %v1192
        %vm1224 = vcmp.eq.s32.totalorder %v1185, %v1196
        %vm1225 = vcmp.eq.s32.totalorder %v1186, %v1192
        %vm1226 = vcmp.eq.s32.totalorder %v1186, %v1196
        %vm1227 = vcmp.eq.s32.totalorder %v1187, %v1192
        %vm1228 = vcmp.eq.s32.totalorder %v1187, %v1196
        %v1229 = vsel %vm1197, 1, 0
        %v1230 = vsel %vm1198, 1, 0
        %v1231 = vsel %vm1199, 1, 0
        %v1232 = vsel %vm1200, 1, 0
        %v1233 = vsel %vm1201, 1, 0
        %v1234 = vsel %vm1202, 1, 0
        %v1235 = vsel %vm1203, 1, 0
        %v1236 = vsel %vm1204, 1, 0
        %v1237 = vsel %vm1205, 1, 0
        %v1238 = vsel %vm1206, 1, 0
        %v1239 = vsel %vm1207, 1, 0
        %v1240 = vsel %vm1208, 1, 0
        %v1241 = vsel %vm1209, 1, 0
        %v1242 = vsel %vm1210, 1, 0
        %v1243 = vsel %vm1211, 1, 0
        %v1244 = vsel %vm1212, 1, 0
        %v1245 = vsel %vm1213, 1, 0
        %v1246 = vsel %vm1214, 1, 0
        %v1247 = vsel %vm1215, 1, 0
        %v1248 = vsel %vm1216, 1, 0
        %v1249 = vsel %vm1217, 1, 0
        %v1250 = vsel %vm1218, 1, 0
        %v1251 = vsel %vm1219, 1, 0
        %v1252 = vsel %vm1220, 1, 0
        %v1253 = vsel %vm1221, 1, 0
        %v1254 = vsel %vm1222, 1, 0
        %v1255 = vsel %vm1223, 1, 0
        %v1256 = vsel %vm1224, 1, 0
        %v1257 = vsel %vm1225, 1, 0
        %v1258 = vsel %vm1226, 1, 0
        %v1259 = vsel %vm1227, 1, 0
        %v1260 = vsel %vm1228, 1, 0
        %v1261 = vcvt.s32.f32 %v1229
        %v1262 = vcvt.s32.f32 %v1230
        %v1263 = vcvt.s32.f32 %v1231
        %v1264 = vcvt.s32.f32 %v1232
        %v1265 = vcvt.s32.f32 %v1233
        %v1266 = vcvt.s32.f32 %v1234
        %v1267 = vcvt.s32.f32 %v1235
        %v1268 = vcvt.s32.f32 %v1236
        %v1269 = vcvt.s32.f32 %v1237
        %v1270 = vcvt.s32.f32 %v1238
        %v1271 = vcvt.s32.f32 %v1239
        %v1272 = vcvt.s32.f32 %v1240
        %v1273 = vcvt.s32.f32 %v1241
        %v1274 = vcvt.s32.f32 %v1242
        %v1275 = vcvt.s32.f32 %v1243
        %v1276 = vcvt.s32.f32 %v1244
        %v1277 = vcvt.s32.f32 %v1245
        %v1278 = vcvt.s32.f32 %v1246
        %v1279 = vcvt.s32.f32 %v1247
        %v1280 = vcvt.s32.f32 %v1248
        %v1281 = vcvt.s32.f32 %v1249
        %v1282 = vcvt.s32.f32 %v1250
        %v1283 = vcvt.s32.f32 %v1251
        %v1284 = vcvt.s32.f32 %v1252
        %v1285 = vcvt.s32.f32 %v1253
        %v1286 = vcvt.s32.f32 %v1254
        %v1287 = vcvt.s32.f32 %v1255
        %v1288 = vcvt.s32.f32 %v1256
        %v1289 = vcvt.s32.f32 %v1257
        %v1290 = vcvt.s32.f32 %v1258
        %v1291 = vcvt.s32.f32 %v1259
        %v1292 = vcvt.s32.f32 %v1260
        %v1293 = vld [vmem:[%s795] sm:$0x3]
        %v1294 = vlaneseq
        %v1295 = vshrl.u32 %v1294, 7
        %v1296 = vsub.s32 0, %v1295
        %v1297 = vrot.slane %v1293, %v1296
        %v1298 = vlaneseq
        %v1299 = vshrl.u32 %v1298, 7
        %v1300 = vsub.s32 1, %v1299
        %v1301 = vrot.slane %v1293, %v1300
        %vm1302 = vcmp.eq.s32.totalorder %v1172, %v1297
        %vm1303 = vcmp.eq.s32.totalorder %v1172, %v1301
        %vm1304 = vcmp.eq.s32.totalorder %v1173, %v1297
        %vm1305 = vcmp.eq.s32.totalorder %v1173, %v1301
        %vm1306 = vcmp.eq.s32.totalorder %v1174, %v1297
        %vm1307 = vcmp.eq.s32.totalorder %v1174, %v1301
        %vm1308 = vcmp.eq.s32.totalorder %v1175, %v1297
        %vm1309 = vcmp.eq.s32.totalorder %v1175, %v1301
        %vm1310 = vcmp.eq.s32.totalorder %v1176, %v1297
        %vm1311 = vcmp.eq.s32.totalorder %v1176, %v1301
        %vm1312 = vcmp.eq.s32.totalorder %v1177, %v1297
        %vm1313 = vcmp.eq.s32.totalorder %v1177, %v1301
        %vm1314 = vcmp.eq.s32.totalorder %v1178, %v1297
        %vm1315 = vcmp.eq.s32.totalorder %v1178, %v1301
        %vm1316 = vcmp.eq.s32.totalorder %v1179, %v1297
        %vm1317 = vcmp.eq.s32.totalorder %v1179, %v1301
        %vm1318 = vcmp.eq.s32.totalorder %v1180, %v1297
        %vm1319 = vcmp.eq.s32.totalorder %v1180, %v1301
        %vm1320 = vcmp.eq.s32.totalorder %v1181, %v1297
        %vm1321 = vcmp.eq.s32.totalorder %v1181, %v1301
        %vm1322 = vcmp.eq.s32.totalorder %v1182, %v1297
        %vm1323 = vcmp.eq.s32.totalorder %v1182, %v1301
        %vm1324 = vcmp.eq.s32.totalorder %v1183, %v1297
        %vm1325 = vcmp.eq.s32.totalorder %v1183, %v1301
        %vm1326 = vcmp.eq.s32.totalorder %v1184, %v1297
        %vm1327 = vcmp.eq.s32.totalorder %v1184, %v1301
        %vm1328 = vcmp.eq.s32.totalorder %v1185, %v1297
        %vm1329 = vcmp.eq.s32.totalorder %v1185, %v1301
        %vm1330 = vcmp.eq.s32.totalorder %v1186, %v1297
        %vm1331 = vcmp.eq.s32.totalorder %v1186, %v1301
        %vm1332 = vcmp.eq.s32.totalorder %v1187, %v1297
        %vm1333 = vcmp.eq.s32.totalorder %v1187, %v1301
        %v1334 = vsel %vm1302, 1, 0
        %v1335 = vsel %vm1303, 1, 0
        %v1336 = vsel %vm1304, 1, 0
        %v1337 = vsel %vm1305, 1, 0
        %v1338 = vsel %vm1306, 1, 0
        %v1339 = vsel %vm1307, 1, 0
        %v1340 = vsel %vm1308, 1, 0
        %v1341 = vsel %vm1309, 1, 0
        %v1342 = vsel %vm1310, 1, 0
        %v1343 = vsel %vm1311, 1, 0
        %v1344 = vsel %vm1312, 1, 0
        %v1345 = vsel %vm1313, 1, 0
        %v1346 = vsel %vm1314, 1, 0
        %v1347 = vsel %vm1315, 1, 0
        %v1348 = vsel %vm1316, 1, 0
        %v1349 = vsel %vm1317, 1, 0
        %v1350 = vsel %vm1318, 1, 0
        %v1351 = vsel %vm1319, 1, 0
        %v1352 = vsel %vm1320, 1, 0
        %v1353 = vsel %vm1321, 1, 0
        %v1354 = vsel %vm1322, 1, 0
        %v1355 = vsel %vm1323, 1, 0
        %v1356 = vsel %vm1324, 1, 0
        %v1357 = vsel %vm1325, 1, 0
        %v1358 = vsel %vm1326, 1, 0
        %v1359 = vsel %vm1327, 1, 0
        %v1360 = vsel %vm1328, 1, 0
        %v1361 = vsel %vm1329, 1, 0
        %v1362 = vsel %vm1330, 1, 0
        %v1363 = vsel %vm1331, 1, 0
        %v1364 = vsel %vm1332, 1, 0
        %v1365 = vsel %vm1333, 1, 0
        %v1366 = vcvt.s32.f32 %v1334
        %v1367 = vcvt.s32.f32 %v1335
        %v1368 = vcvt.s32.f32 %v1336
        %v1369 = vcvt.s32.f32 %v1337
        %v1370 = vcvt.s32.f32 %v1338
        %v1371 = vcvt.s32.f32 %v1339
        %v1372 = vcvt.s32.f32 %v1340
        %v1373 = vcvt.s32.f32 %v1341
        %v1374 = vcvt.s32.f32 %v1342
        %v1375 = vcvt.s32.f32 %v1343
        %v1376 = vcvt.s32.f32 %v1344
        %v1377 = vcvt.s32.f32 %v1345
        %v1378 = vcvt.s32.f32 %v1346
        %v1379 = vcvt.s32.f32 %v1347
        %v1380 = vcvt.s32.f32 %v1348
        %v1381 = vcvt.s32.f32 %v1349
        %v1382 = vcvt.s32.f32 %v1350
        %v1383 = vcvt.s32.f32 %v1351
        %v1384 = vcvt.s32.f32 %v1352
        %v1385 = vcvt.s32.f32 %v1353
        %v1386 = vcvt.s32.f32 %v1354
        %v1387 = vcvt.s32.f32 %v1355
        %v1388 = vcvt.s32.f32 %v1356
        %v1389 = vcvt.s32.f32 %v1357
        %v1390 = vcvt.s32.f32 %v1358
        %v1391 = vcvt.s32.f32 %v1359
        %v1392 = vcvt.s32.f32 %v1360
        %v1393 = vcvt.s32.f32 %v1361
        %v1394 = vcvt.s32.f32 %v1362
        %v1395 = vcvt.s32.f32 %v1363
        %v1396 = vcvt.s32.f32 %v1364
        %v1397 = vcvt.s32.f32 %v1365
        %v1398 = vsub.f32 %v1261, %v1366
        %v1399 = vsub.f32 %v1262, %v1367
        %v1400 = vsub.f32 %v1263, %v1368
        %v1401 = vsub.f32 %v1264, %v1369
        %v1402 = vsub.f32 %v1265, %v1370
        %v1403 = vsub.f32 %v1266, %v1371
        %v1404 = vsub.f32 %v1267, %v1372
        %v1405 = vsub.f32 %v1268, %v1373
        %v1406 = vsub.f32 %v1269, %v1374
        %v1407 = vsub.f32 %v1270, %v1375
        %v1408 = vsub.f32 %v1271, %v1376
        %v1409 = vsub.f32 %v1272, %v1377
        %v1410 = vsub.f32 %v1273, %v1378
        %v1411 = vsub.f32 %v1274, %v1379
        %v1412 = vsub.f32 %v1275, %v1380
        %v1413 = vsub.f32 %v1276, %v1381
        %v1414 = vsub.f32 %v1277, %v1382
        %v1415 = vsub.f32 %v1278, %v1383
        %v1416 = vsub.f32 %v1279, %v1384
        %v1417 = vsub.f32 %v1280, %v1385
        %v1418 = vsub.f32 %v1281, %v1386
        %v1419 = vsub.f32 %v1282, %v1387
        %v1420 = vsub.f32 %v1283, %v1388
        %v1421 = vsub.f32 %v1284, %v1389
        %v1422 = vsub.f32 %v1285, %v1390
        %v1423 = vsub.f32 %v1286, %v1391
        %v1424 = vsub.f32 %v1287, %v1392
        %v1425 = vsub.f32 %v1288, %v1393
        %v1426 = vsub.f32 %v1289, %v1394
        %v1427 = vsub.f32 %v1290, %v1395
        %v1428 = vsub.f32 %v1291, %v1396
        %v1429 = vsub.f32 %v1292, %v1397
        %v1430 = vld [vmem:[%s787] sm:$0x7]
        %1431 = vmatprep.subr.mxu0 %v1399
        %1432 = vmatpush1.msra.mxu0 %v1398
        %1433 = vmatprep.subr.mxu0 %v1401
        %1434 = vmatpush1.msra.mxu0 %v1400
        %1435 = vmatprep.subr.mxu0 %v1403
        %1436 = vmatpush1.msra.mxu0 %v1402
        %1437 = vmatprep.subr.mxu0 %v1405
        %1438 = vmatpush1.msra.mxu0 %v1404
        %1439 = vmatprep.subr.mxu0 %v1407
        %1440 = vmatpush1.msra.mxu0 %v1406
        %1441 = vmatprep.subr.mxu0 %v1409
        %1442 = vmatpush1.msra.mxu0 %v1408
        %1443 = vmatprep.subr.mxu0 %v1411
        %1444 = vmatpush1.msra.mxu0 %v1410
        %1445 = vmatprep.subr.mxu0 %v1413
        %1446 = vmatpush1.msra.mxu0 %v1412
        %1447 = vmatprep.subr.mxu0 %v1415
        %1448 = vmatpush1.msra.mxu0 %v1414
        %1449 = vmatprep.subr.mxu0 %v1417
        %1450 = vmatpush1.msra.mxu0 %v1416
        %1451 = vmatprep.subr.mxu0 %v1419
        %1452 = vmatpush1.msra.mxu0 %v1418
        %1453 = vmatprep.subr.mxu0 %v1421
        %1454 = vmatpush1.msra.mxu0 %v1420
        %1455 = vmatprep.subr.mxu0 %v1423
        %1456 = vmatpush1.msra.mxu0 %v1422
        %1457 = vmatprep.subr.mxu0 %v1425
        %1458 = vmatpush1.msra.mxu0 %v1424
        %1459 = vmatprep.subr.mxu0 %v1427
        %1460 = vmatpush1.msra.mxu0 %v1426
        %1461 = vmatprep.subr.mxu0 %v1429
        %1462 = vmatpush1.msra.mxu0 %v1428
        %1463 = vmatprep.subr.mxu0 0.0
        %1464 = vmatpush1.msra.mxu0 0.0
        %1465 = vmatprep.subr.mxu0 0.0
        %1466 = vmatpush1.msra.mxu0 0.0
        %1467 = vmatprep.subr.mxu0 0.0
        %1468 = vmatpush1.msra.mxu0 0.0
        %1469 = vmatprep.subr.mxu0 0.0
        %1470 = vmatpush1.msra.mxu0 0.0
        %1471 = vmatprep.subr.mxu0 0.0
        %1472 = vmatpush1.msra.mxu0 0.0
        %1473 = vmatprep.subr.mxu0 0.0
        %1474 = vmatpush1.msra.mxu0 0.0
        %1475 = vmatprep.subr.mxu0 0.0
        %1476 = vmatpush1.msra.mxu0 0.0
        %1477 = vmatprep.subr.mxu0 0.0
        %1478 = vmatpush1.msra.mxu0 0.0
        %1479 = vmatprep.subr.mxu0 0.0
        %1480 = vmatpush1.msra.mxu0 0.0
        %1481 = vmatprep.subr.mxu0 0.0
        %1482 = vmatpush1.msra.mxu0 0.0
        %1483 = vmatprep.subr.mxu0 0.0
        %1484 = vmatpush1.msra.mxu0 0.0
        %1485 = vmatprep.subr.mxu0 0.0
        %1486 = vmatpush1.msra.mxu0 0.0
        %1487 = vmatprep.subr.mxu0 0.0
        %1488 = vmatpush1.msra.mxu0 0.0
        %1489 = vmatprep.subr.mxu0 0.0
        %1490 = vmatpush1.msra.mxu0 0.0
        %1491 = vmatprep.subr.mxu0 0.0
        %1492 = vmatpush1.msra.mxu0 0.0
        %1493 = vmatprep.subr.mxu0 0.0
        %1494 = vmatpush1.msra.mxu0 0.0
        %1495 = vmatprep.mubr.f32.mxu0 0.0
        %1496 = vmatmul.mubr.f32.gmra.mrb[0].mxu0 %v1430
        %v1497 = vpop.f32.mrb[0].mxu0
        %v1498 = vadd.f32 0.0, %v1497
        %v1499 = vpop.f32.mrb[0].mxu0
        %v1500 = vadd.f32 0.0, %v1499
        %1501 = vdwg.mxu0
        %v1502 = vmul.f32 %v1498, %v1498
        %v1503 = vmul.f32 %v1500, %v1500
        %v1506 = vrot.slane %v1502, 1
        %v1507 = vrot.slane %v1503, 1
        %v1510 = vadd.f32 %v1502, %v1506
        %v1511 = vadd.f32 %v1503, %v1507
        %v1512 = vrot.slane %v1502, 2
        %v1513 = vrot.slane %v1503, 2
        %v1516 = vadd.f32 %v1510, %v1512
        %v1517 = vadd.f32 %v1511, %v1513
        %v1518 = vrsqrt.pop %v1516
        %v1519 = vmul.f32 %v1516, %v1518
        %vm1520 = vcmp.eq.f32.partialorder %v1516, inf
        %v1521 = vsel %vm1520, %v1516, %v1519
        %vm1522 = vcmp.eq.f32.partialorder %v1516, 0.0
        %v1523 = vand.u32 %v1516, 2147483648
        %v1524 = vsel %vm1522, %v1523, %v1521
        %v1525 = vrsqrt.pop %v1517
        %v1526 = vmul.f32 %v1517, %v1525
        %vm1527 = vcmp.eq.f32.partialorder %v1517, inf
        %v1528 = vsel %vm1527, %v1517, %v1526
        %vm1529 = vcmp.eq.f32.partialorder %v1517, 0.0
        %v1530 = vand.u32 %v1517, 2147483648
        %v1531 = vsel %vm1529, %v1530, %v1528
        %v1534 = vcombine.low %v1524, %v1531
        %v1536 = vunpack.c.l.s4 1966171168
        %v1537 = vunpack.c.0.s8 %v1536
        %v1538 = vlaneseq
        %v1539 = vshrl.u32 %v1538, 7
        %v1540 = vsub.s32 %v1537, %v1539
        %v1541 = vrot.slane %v1534, %v1540
        %v1543 = vunpack.c.l.s4 1966171168
        %v1544 = vunpack.c.0.s8 %v1543
        %v1545 = vlaneseq
        %v1546 = vshrl.u32 %v1545, 7
        %v1547 = vsub.s32 %v1544, %v1546
        %v1548 = vrot.slane %v1541, %v1547
        %v1550 = vlaneseq
        %vm1551 = vcmp.ge.s32.totalorder %v1550, 0
        %vm1552 = vcmp.lt.s32.totalorder %v1550, 256
        %vm1553 = vmand %vm1551, %vm1552
        %1554 = vst.msk [vmem:[%s807] sm:$0x3] %vm1553, %v1548
        %v1555 = vld [vmem:[%s799] sm:$0xff]
        %vm1556 = vcmp.eq.f32.partialorder %v1555, 0.0
        %v1557 = vlog2.pop %v1555
        %v1558 = vmul.f32 %v1557, 0.6931472
        %v1559 = vmul.f32 %v1558, 2.0
        %v1560 = vsel %vm1556, -1.0, %v1559
        %vm1561 = vcmp.eq.f32.partialorder %v1555, 1.0
        %v1562 = vsel %vm1561, 1.0, %v1560
        %v1563 = vld [vmem:[%s782] sm:$0xff]
        %1564 = vmatprep.subr.mxu0 0.0
        %1565 = vmatpush1.msra.mxu0 %v1039
        %1566 = vmatprep.subr.mxu0 0.0
        %1567 = vmatpush1.msra.mxu0 %v1040
        %1568 = vmatprep.subr.mxu0 0.0
        %1569 = vmatpush1.msra.mxu0 %v1041
        %1570 = vmatprep.subr.mxu0 0.0
        %1571 = vmatpush1.msra.mxu0 %v1042
        %1572 = vmatprep.subr.mxu0 0.0
        %1573 = vmatpush1.msra.mxu0 %v1043
        %1574 = vmatprep.subr.mxu0 0.0
        %1575 = vmatpush1.msra.mxu0 %v1044
        %1576 = vmatprep.subr.mxu0 0.0
        %1577 = vmatpush1.msra.mxu0 %v1045
        %1578 = vmatprep.subr.mxu0 0.0
        %1579 = vmatpush1.msra.mxu0 %v1046
        %1580 = vmatprep.subr.mxu0 0.0
        %1581 = vmatpush1.msra.mxu0 %v1047
        %1582 = vmatprep.subr.mxu0 0.0
        %1583 = vmatpush1.msra.mxu0 %v1048
        %1584 = vmatprep.subr.mxu0 0.0
        %1585 = vmatpush1.msra.mxu0 %v1049
        %1586 = vmatprep.subr.mxu0 0.0
        %1587 = vmatpush1.msra.mxu0 %v1050
        %1588 = vmatprep.subr.mxu0 0.0
        %1589 = vmatpush1.msra.mxu0 %v1051
        %1590 = vmatprep.subr.mxu0 0.0
        %1591 = vmatpush1.msra.mxu0 %v1052
        %1592 = vmatprep.subr.mxu0 0.0
        %1593 = vmatpush1.msra.mxu0 %v1053
        %1594 = vmatprep.subr.mxu0 0.0
        %1595 = vmatpush1.msra.mxu0 %v1054
        %1596 = vmatprep.subr.mxu0 0.0
        %1597 = vmatpush1.msra.mxu0 0.0
        %1598 = vmatprep.subr.mxu0 0.0
        %1599 = vmatpush1.msra.mxu0 0.0
        %1600 = vmatprep.subr.mxu0 0.0
        %1601 = vmatpush1.msra.mxu0 0.0
        %1602 = vmatprep.subr.mxu0 0.0
        %1603 = vmatpush1.msra.mxu0 0.0
        %1604 = vmatprep.subr.mxu0 0.0
        %1605 = vmatpush1.msra.mxu0 0.0
        %1606 = vmatprep.subr.mxu0 0.0
        %1607 = vmatpush1.msra.mxu0 0.0
        %1608 = vmatprep.subr.mxu0 0.0
        %1609 = vmatpush1.msra.mxu0 0.0
        %1610 = vmatprep.subr.mxu0 0.0
        %1611 = vmatpush1.msra.mxu0 0.0
        %1612 = vmatprep.subr.mxu0 0.0
        %1613 = vmatpush1.msra.mxu0 0.0
        %1614 = vmatprep.subr.mxu0 0.0
        %1615 = vmatpush1.msra.mxu0 0.0
        %1616 = vmatprep.subr.mxu0 0.0
        %1617 = vmatpush1.msra.mxu0 0.0
        %1618 = vmatprep.subr.mxu0 0.0
        %1619 = vmatpush1.msra.mxu0 0.0
        %1620 = vmatprep.subr.mxu0 0.0
        %1621 = vmatpush1.msra.mxu0 0.0
        %1622 = vmatprep.subr.mxu0 0.0
        %1623 = vmatpush1.msra.mxu0 0.0
        %1624 = vmatprep.subr.mxu0 0.0
        %1625 = vmatpush1.msra.mxu0 0.0
        %1626 = vmatprep.subr.mxu0 0.0
        %1627 = vmatpush1.msra.mxu0 0.0
        %1628 = vmatprep.mubr.f32.mxu0 0.0
        %1629 = vmatmul.mubr.f32.gmra.mrb[0].mxu0 %v1563
        %v1630 = vpop.f32.mrb[0].mxu0
        %v1631 = vadd.f32 0.0, %v1630
        %v1632 = vpop.f32.mrb[0].mxu0
        %1633 = vdwg.mxu0
        %v1634 = vld [vmem:[%s11] sm:$0xff]
        %v1635 = vld [vmem:[%s11 + $0x8] sm:$0xff]
        %v1636 = vld [vmem:[%s11 + $0x10] sm:$0xff]
        %v1637 = vld [vmem:[%s11 + $0x18] sm:$0xff]
        %v1638 = vld [vmem:[%s12] sm:$0x1]
        %v1640 = vlaneseq
        %v1641 = vshrl.u32 %v1640, 7
        %v1642 = vsub.s32 0, %v1641
        %v1643 = vrot.slane %v1638, %v1642
        %vm1645 = vcmask 261120
        %v1647 = vsel %vm1645, %v1631, 0
        %1649 = vmatprep.subr.mxu0 0.0
        %1650 = vmatpush1.msra.mxu0 %v1634
        %1651 = vmatprep.subr.mxu0 0.0
        %1652 = vmatpush1.msra.mxu0 %v1635
        %1653 = vmatprep.subr.mxu0 0.0
        %1654 = vmatpush1.msra.mxu0 %v1636
        %1655 = vmatprep.subr.mxu0 0.0
        %1656 = vmatpush1.msra.mxu0 %v1637
        %1657 = vmatprep.subr.mxu0 0.0
        %1658 = vmatpush1.msra.mxu0 0.0
        %1659 = vmatprep.subr.mxu0 0.0
        %1660 = vmatpush1.msra.mxu0 0.0
        %1661 = vmatprep.subr.mxu0 0.0
        %1662 = vmatpush1.msra.mxu0 0.0
        %1663 = vmatprep.subr.mxu0 0.0
        %1664 = vmatpush1.msra.mxu0 0.0
        %1665 = vmatprep.subr.mxu0 0.0
        %1666 = vmatpush1.msra.mxu0 0.0
        %1667 = vmatprep.subr.mxu0 0.0
        %1668 = vmatpush1.msra.mxu0 0.0
        %1669 = vmatprep.subr.mxu0 0.0
        %1670 = vmatpush1.msra.mxu0 0.0
        %1671 = vmatprep.subr.mxu0 0.0
        %1672 = vmatpush1.msra.mxu0 0.0
        %1673 = vmatprep.subr.mxu0 0.0
        %1674 = vmatpush1.msra.mxu0 0.0
        %1675 = vmatprep.subr.mxu0 0.0
        %1676 = vmatpush1.msra.mxu0 0.0
        %1677 = vmatprep.subr.mxu0 0.0
        %1678 = vmatpush1.msra.mxu0 0.0
        %1679 = vmatprep.subr.mxu0 0.0
        %1680 = vmatpush1.msra.mxu0 0.0
        %1681 = vmatprep.subr.mxu0 0.0
        %1682 = vmatpush1.msra.mxu0 0.0
        %1683 = vmatprep.subr.mxu0 0.0
        %1684 = vmatpush1.msra.mxu0 0.0
        %1685 = vmatprep.subr.mxu0 0.0
        %1686 = vmatpush1.msra.mxu0 0.0
        %1687 = vmatprep.subr.mxu0 0.0
        %1688 = vmatpush1.msra.mxu0 0.0
        %1689 = vmatprep.subr.mxu0 0.0
        %1690 = vmatpush1.msra.mxu0 0.0
        %1691 = vmatprep.subr.mxu0 0.0
        %1692 = vmatpush1.msra.mxu0 0.0
        %1693 = vmatprep.subr.mxu0 0.0
        %1694 = vmatpush1.msra.mxu0 0.0
        %1695 = vmatprep.subr.mxu0 0.0
        %1696 = vmatpush1.msra.mxu0 0.0
        %1697 = vmatprep.subr.mxu0 0.0
        %1698 = vmatpush1.msra.mxu0 0.0
        %1699 = vmatprep.subr.mxu0 0.0
        %1700 = vmatpush1.msra.mxu0 0.0
        %1701 = vmatprep.subr.mxu0 0.0
        %1702 = vmatpush1.msra.mxu0 0.0
        %1703 = vmatprep.subr.mxu0 0.0
        %1704 = vmatpush1.msra.mxu0 0.0
        %1705 = vmatprep.subr.mxu0 0.0
        %1706 = vmatpush1.msra.mxu0 0.0
        %1707 = vmatprep.subr.mxu0 0.0
        %1708 = vmatpush1.msra.mxu0 0.0
        %1709 = vmatprep.subr.mxu0 0.0
        %1710 = vmatpush1.msra.mxu0 0.0
        %1711 = vmatprep.subr.mxu0 0.0
        %1712 = vmatpush1.msra.mxu0 0.0
        %1713 = vmatprep.mubr.f32.mxu0 0.0
        %1714 = vmatmul.mubr.f32.gmra.mrb[0].mxu0 %v1647
        %v1715 = vpop.f32.mrb[0].mxu0
        %v1716 = vadd.f32 %v1643, %v1715
        %v1717 = vpop.f32.mrb[0].mxu0
        %1718 = vdwg.mxu0
        %v1719 = vmax.f32 %v1716, 0.0
        %v1720 = vld [vmem:[%s13] sm:$0xff]
        %v1721 = vld [vmem:[%s13 + $0x8] sm:$0xff]
        %v1722 = vld [vmem:[%s14] sm:$0x1]
        %v1724 = vlaneseq
        %v1725 = vshrl.u32 %v1724, 7
        %v1726 = vsub.s32 0, %v1725
        %v1727 = vrot.slane %v1722, %v1726
        %vm1729 = vcmask 130048
        %v1731 = vsel %vm1729, %v1719, 0
        %1733 = vmatprep.subr.mxu0 0.0
        %1734 = vmatpush1.msra.mxu0 %v1720
        %1735 = vmatprep.subr.mxu0 0.0
        %1736 = vmatpush1.msra.mxu0 %v1721
        %1737 = vmatprep.subr.mxu0 0.0
        %1738 = vmatpush1.msra.mxu0 0.0
        %1739 = vmatprep.subr.mxu0 0.0
        %1740 = vmatpush1.msra.mxu0 0.0
        %1741 = vmatprep.subr.mxu0 0.0
        %1742 = vmatpush1.msra.mxu0 0.0
        %1743 = vmatprep.subr.mxu0 0.0
        %1744 = vmatpush1.msra.mxu0 0.0
        %1745 = vmatprep.subr.mxu0 0.0
        %1746 = vmatpush1.msra.mxu0 0.0
        %1747 = vmatprep.subr.mxu0 0.0
        %1748 = vmatpush1.msra.mxu0 0.0
        %1749 = vmatprep.subr.mxu0 0.0
        %1750 = vmatpush1.msra.mxu0 0.0
        %1751 = vmatprep.subr.mxu0 0.0
        %1752 = vmatpush1.msra.mxu0 0.0
        %1753 = vmatprep.subr.mxu0 0.0
        %1754 = vmatpush1.msra.mxu0 0.0
        %1755 = vmatprep.subr.mxu0 0.0
        %1756 = vmatpush1.msra.mxu0 0.0
        %1757 = vmatprep.subr.mxu0 0.0
        %1758 = vmatpush1.msra.mxu0 0.0
        %1759 = vmatprep.subr.mxu0 0.0
        %1760 = vmatpush1.msra.mxu0 0.0
        %1761 = vmatprep.subr.mxu0 0.0
        %1762 = vmatpush1.msra.mxu0 0.0
        %1763 = vmatprep.subr.mxu0 0.0
        %1764 = vmatpush1.msra.mxu0 0.0
        %1765 = vmatprep.subr.mxu0 0.0
        %1766 = vmatpush1.msra.mxu0 0.0
        %1767 = vmatprep.subr.mxu0 0.0
        %1768 = vmatpush1.msra.mxu0 0.0
        %1769 = vmatprep.subr.mxu0 0.0
        %1770 = vmatpush1.msra.mxu0 0.0
        %1771 = vmatprep.subr.mxu0 0.0
        %1772 = vmatpush1.msra.mxu0 0.0
        %1773 = vmatprep.subr.mxu0 0.0
        %1774 = vmatpush1.msra.mxu0 0.0
        %1775 = vmatprep.subr.mxu0 0.0
        %1776 = vmatpush1.msra.mxu0 0.0
        %1777 = vmatprep.subr.mxu0 0.0
        %1778 = vmatpush1.msra.mxu0 0.0
        %1779 = vmatprep.subr.mxu0 0.0
        %1780 = vmatpush1.msra.mxu0 0.0
        %1781 = vmatprep.subr.mxu0 0.0
        %1782 = vmatpush1.msra.mxu0 0.0
        %1783 = vmatprep.subr.mxu0 0.0
        %1784 = vmatpush1.msra.mxu0 0.0
        %1785 = vmatprep.subr.mxu0 0.0
        %1786 = vmatpush1.msra.mxu0 0.0
        %1787 = vmatprep.subr.mxu0 0.0
        %1788 = vmatpush1.msra.mxu0 0.0
        %1789 = vmatprep.subr.mxu0 0.0
        %1790 = vmatpush1.msra.mxu0 0.0
        %1791 = vmatprep.subr.mxu0 0.0
        %1792 = vmatpush1.msra.mxu0 0.0
        %1793 = vmatprep.subr.mxu0 0.0
        %1794 = vmatpush1.msra.mxu0 0.0
        %1795 = vmatprep.subr.mxu0 0.0
        %1796 = vmatpush1.msra.mxu0 0.0
        %1797 = vmatprep.mubr.f32.mxu0 0.0
        %1798 = vmatmul.mubr.f32.gmra.mrb[0].mxu0 %v1731
        %v1799 = vpop.f32.mrb[0].mxu0
        %v1800 = vadd.f32 %v1727, %v1799
        %v1801 = vpop.f32.mrb[0].mxu0
        %1802 = vdwg.mxu0
        %v1803 = vmax.f32 %v1800, 0.0
        %v1804 = vld [vmem:[%s15] sm:$0xff]
        %v1805 = vld [vmem:[%s16] sm:$0x1]
        %v1807 = vlaneseq
        %v1808 = vshrl.u32 %v1807, 7
        %v1809 = vsub.s32 0, %v1808
        %v1810 = vrot.slane %v1805, %v1809
        %vm1812 = vcmask 64512
        %v1814 = vsel %vm1812, %v1803, 0
        %1816 = vmatprep.subr.mxu0 0.0
        %1817 = vmatpush1.msra.mxu0 %v1804
        %1818 = vmatprep.subr.mxu0 0.0
        %1819 = vmatpush1.msra.mxu0 0.0
        %1820 = vmatprep.subr.mxu0 0.0
        %1821 = vmatpush1.msra.mxu0 0.0
        %1822 = vmatprep.subr.mxu0 0.0
        %1823 = vmatpush1.msra.mxu0 0.0
        %1824 = vmatprep.subr.mxu0 0.0
        %1825 = vmatpush1.msra.mxu0 0.0
        %1826 = vmatprep.subr.mxu0 0.0
        %1827 = vmatpush1.msra.mxu0 0.0
        %1828 = vmatprep.subr.mxu0 0.0
        %1829 = vmatpush1.msra.mxu0 0.0
        %1830 = vmatprep.subr.mxu0 0.0
        %1831 = vmatpush1.msra.mxu0 0.0
        %1832 = vmatprep.subr.mxu0 0.0
        %1833 = vmatpush1.msra.mxu0 0.0
        %1834 = vmatprep.subr.mxu0 0.0
        %1835 = vmatpush1.msra.mxu0 0.0
        %1836 = vmatprep.subr.mxu0 0.0
        %1837 = vmatpush1.msra.mxu0 0.0
        %1838 = vmatprep.subr.mxu0 0.0
        %1839 = vmatpush1.msra.mxu0 0.0
        %1840 = vmatprep.subr.mxu0 0.0
        %1841 = vmatpush1.msra.mxu0 0.0
        %1842 = vmatprep.subr.mxu0 0.0
        %1843 = vmatpush1.msra.mxu0 0.0
        %1844 = vmatprep.subr.mxu0 0.0
        %1845 = vmatpush1.msra.mxu0 0.0
        %1846 = vmatprep.subr.mxu0 0.0
        %1847 = vmatpush1.msra.mxu0 0.0
        %1848 = vmatprep.subr.mxu0 0.0
        %1849 = vmatpush1.msra.mxu0 0.0
        %1850 = vmatprep.subr.mxu0 0.0
        %1851 = vmatpush1.msra.mxu0 0.0
        %1852 = vmatprep.subr.mxu0 0.0
        %1853 = vmatpush1.msra.mxu0 0.0
        %1854 = vmatprep.subr.mxu0 0.0
        %1855 = vmatpush1.msra.mxu0 0.0
        %1856 = vmatprep.subr.mxu0 0.0
        %1857 = vmatpush1.msra.mxu0 0.0
        %1858 = vmatprep.subr.mxu0 0.0
        %1859 = vmatpush1.msra.mxu0 0.0
        %1860 = vmatprep.subr.mxu0 0.0
        %1861 = vmatpush1.msra.mxu0 0.0
        %1862 = vmatprep.subr.mxu0 0.0
        %1863 = vmatpush1.msra.mxu0 0.0
        %1864 = vmatprep.subr.mxu0 0.0
        %1865 = vmatpush1.msra.mxu0 0.0
        %1866 = vmatprep.subr.mxu0 0.0
        %1867 = vmatpush1.msra.mxu0 0.0
        %1868 = vmatprep.subr.mxu0 0.0
        %1869 = vmatpush1.msra.mxu0 0.0
        %1870 = vmatprep.subr.mxu0 0.0
        %1871 = vmatpush1.msra.mxu0 0.0
        %1872 = vmatprep.subr.mxu0 0.0
        %1873 = vmatpush1.msra.mxu0 0.0
        %1874 = vmatprep.subr.mxu0 0.0
        %1875 = vmatpush1.msra.mxu0 0.0
        %1876 = vmatprep.subr.mxu0 0.0
        %1877 = vmatpush1.msra.mxu0 0.0
        %1878 = vmatprep.subr.mxu0 0.0
        %1879 = vmatpush1.msra.mxu0 0.0
        %1880 = vmatprep.mubr.f32.mxu0 0.0
        %1881 = vmatmul.mubr.f32.gmra.mrb[0].mxu0 %v1814
        %v1882 = vpop.f32.mrb[0].mxu0
        %v1883 = vadd.f32 %v1810, %v1882
        %v1884 = vpop.f32.mrb[0].mxu0
        %1885 = vdwg.mxu0
        %v1886 = vmax.f32 %v1883, 0.0
        %v1887 = vld [vmem:[%s17] sm:$0xf]
        %v1888 = vld [vmem:[#allocation2] sm:$0x1]
        %v1890 = vlaneseq
        %v1891 = vshrl.u32 %v1890, 7
        %v1892 = vsub.s32 0, %v1891
        %v1893 = vrot.slane %v1888, %v1892
        %vm1895 = vcmask 31744
        %v1897 = vsel %vm1895, %v1886, 0
        %vm1899 = vcmask 1043456
        %v1901 = vsel %vm1899, %v1887, 0
        %1903 = vmatprep.subr.mxu0 0.0
        %1904 = vmatpush1.msra.mxu0 %v1901
        %1905 = vmatprep.subr.mxu0 0.0
        %1906 = vmatpush1.msra.mxu0 0.0
        %1907 = vmatprep.subr.mxu0 0.0
        %1908 = vmatpush1.msra.mxu0 0.0
        %1909 = vmatprep.subr.mxu0 0.0
        %1910 = vmatpush1.msra.mxu0 0.0
        %1911 = vmatprep.subr.mxu0 0.0
        %1912 = vmatpush1.msra.mxu0 0.0
        %1913 = vmatprep.subr.mxu0 0.0
        %1914 = vmatpush1.msra.mxu0 0.0
        %1915 = vmatprep.subr.mxu0 0.0
        %1916 = vmatpush1.msra.mxu0 0.0
        %1917 = vmatprep.subr.mxu0 0.0
        %1918 = vmatpush1.msra.mxu0 0.0
        %1919 = vmatprep.subr.mxu0 0.0
        %1920 = vmatpush1.msra.mxu0 0.0
        %1921 = vmatprep.subr.mxu0 0.0
        %1922 = vmatpush1.msra.mxu0 0.0
        %1923 = vmatprep.subr.mxu0 0.0
        %1924 = vmatpush1.msra.mxu0 0.0
        %1925 = vmatprep.subr.mxu0 0.0
        %1926 = vmatpush1.msra.mxu0 0.0
        %1927 = vmatprep.subr.mxu0 0.0
        %1928 = vmatpush1.msra.mxu0 0.0
        %1929 = vmatprep.subr.mxu0 0.0
        %1930 = vmatpush1.msra.mxu0 0.0
        %1931 = vmatprep.subr.mxu0 0.0
        %1932 = vmatpush1.msra.mxu0 0.0
        %1933 = vmatprep.subr.mxu0 0.0
        %1934 = vmatpush1.msra.mxu0 0.0
        %1935 = vmatprep.subr.mxu0 0.0
        %1936 = vmatpush1.msra.mxu0 0.0
        %1937 = vmatprep.subr.mxu0 0.0
        %1938 = vmatpush1.msra.mxu0 0.0
        %1939 = vmatprep.subr.mxu0 0.0
        %1940 = vmatpush1.msra.mxu0 0.0
        %1941 = vmatprep.subr.mxu0 0.0
        %1942 = vmatpush1.msra.mxu0 0.0
        %1943 = vmatprep.subr.mxu0 0.0
        %1944 = vmatpush1.msra.mxu0 0.0
        %1945 = vmatprep.subr.mxu0 0.0
        %1946 = vmatpush1.msra.mxu0 0.0
        %1947 = vmatprep.subr.mxu0 0.0
        %1948 = vmatpush1.msra.mxu0 0.0
        %1949 = vmatprep.subr.mxu0 0.0
        %1950 = vmatpush1.msra.mxu0 0.0
        %1951 = vmatprep.subr.mxu0 0.0
        %1952 = vmatpush1.msra.mxu0 0.0
        %1953 = vmatprep.subr.mxu0 0.0
        %1954 = vmatpush1.msra.mxu0 0.0
        %1955 = vmatprep.subr.mxu0 0.0
        %1956 = vmatpush1.msra.mxu0 0.0
        %1957 = vmatprep.subr.mxu0 0.0
        %1958 = vmatpush1.msra.mxu0 0.0
        %1959 = vmatprep.subr.mxu0 0.0
        %1960 = vmatpush1.msra.mxu0 0.0
        %1961 = vmatprep.subr.mxu0 0.0
        %1962 = vmatpush1.msra.mxu0 0.0
        %1963 = vmatprep.subr.mxu0 0.0
        %1964 = vmatpush1.msra.mxu0 0.0
        %1965 = vmatprep.subr.mxu0 0.0
        %1966 = vmatpush1.msra.mxu0 0.0
        %1967 = vmatprep.mubr.f32.mxu0 0.0
        %1968 = vmatmul.mubr.f32.gmra.mrb[0].mxu0 %v1897
        %v1969 = vpop.f32.mrb[0].mxu0
        %v1970 = vadd.f32 %v1893, %v1969
        %v1971 = vpop.f32.mrb[0].mxu0
        %1972 = vdwg.mxu0
        %1973 = vst [vmem:[%s803] sm:$0xff] 0.0
        %vm1974 = vcmask 7168
        %1975 = vst.msk [vmem:[%s803] sm:$0xff] %vm1974, %v1970
        %1977 = vrot.lane.b32.xlu0 %v1562, 1
        %v1978 = vpop.permute.xlu0 %1977
        %vm1980 = vcmask 269320
        %1981 = vst.msk [vmem:[%s803] sm:$0xff] %vm1980, %v1978
        %p1982 = scmp.lt.s32.totalorder %s35, 1
        %s1983 = scalar_select %p1982, %s35, 1
        %s1984 = smul.addr %s1983, 8
        %s1985 = scalar_lea.vmem %s19, %s1984
        %p1986 = scmp.lt.s32.totalorder %s35, 1
        %s1987 = scalar_select %p1986, %s35, 1
        %s1988 = smul.addr %s1987, 2
        %s1989 = scalar_lea.vmem %s20, %s1988
        %s1990 = sand.u32 %s529, 1
        %s1991 = sand.u32 %s529, 1
        %s1992 = smul.addr %s1991, 32
        %s1993 = scalar_lea.vmem [#allocation4], %s1992
        // Predicated region
        $region120: #{dmpnn_forward.1} parent=114 // pred_check
          %p1994 = pneg %p487
        $region121: #{dmpnn_forward.1} parent=114 // pred_check_branch
          %1996 = sbr.rel (%p1994) target = $region123
        $region122: #{dmpnn_forward.1} parent=114 // pred_region
          _
        $region123: #{dmpnn_forward.1} parent=114 // pred_fallthru
          _
        // Predicated region
        $region124: #{dmpnn_forward.1} parent=114 // pred_check
          %p1997 = pneg %p513
        $region125: #{dmpnn_forward.1} parent=114 // pred_check_branch
          %1999 = sbr.rel (%p1997) target = $region127
        $region126: #{dmpnn_forward.1} parent=114 // pred_region
          _
        $region127: #{dmpnn_forward.1} parent=114 // pred_fallthru
          _
        // Predicated region
        $region128: #{dmpnn_forward.1} parent=114 // pred_check
          %p2000 = pneg %p539
        $region129: #{dmpnn_forward.1} parent=114 // pred_check_branch
          %2002 = sbr.rel (%p2000) target = $region131
        $region130: #{dmpnn_forward.1} parent=114 // pred_region
          %s2003 = smul.u32 2, %s35
          %s2004 = smul.addr %s2003, 8
          %s2005 = scalar_lea.vmem %s21, %s2004
          // Predicated region
          $region132: #{dmpnn_forward.1} parent=130 // pred_check
            _
          $region133: #{dmpnn_forward.1} parent=130 // pred_check_branch
            %2007 = sbr.rel (0) target = $region135
          $region134: #{dmpnn_forward.1} parent=130 // pred_region
            // Predicated region
            $region136: #{dmpnn_forward.1} parent=134 // pred_check
              _
            $region137: #{dmpnn_forward.1} parent=134 // pred_check_branch
              %2009 = sbr.rel (0) target = $region139
            $region138: #{dmpnn_forward.1} parent=134 // pred_region
              loop: start=0, step=1, limit=1
              $region140: #{dmpnn_forward.1} parent=138 // loop_pre_header
                _
              $region141: #{dmpnn_forward.1} parent=138 // loop_header
                %s2011 = sphi 0, %s2015
                %p2012 = scmp.ge.s32.totalorder %s2011, 1
                %s2016 = sphi %s1993, %s1993
                %s2017 = sphi %s2005, %s2005
              $region142: #{dmpnn_forward.1} parent=138 // loop_header_branch
                %2014 = sbr.rel (%p2012) target = $region146
              $region143: #{dmpnn_forward.1} parent=138 // loop_body
                %v2018 = vld [vmem:[%s2016] sm:$0xff]
                %2019 = vst [vmem:[%s2017] sm:$0xff] %v2018
                %v2020 = vld [vmem:[%s2016 + $0x8] sm:$0xff]
                %2021 = vst [vmem:[%s2017 + $0x8] sm:$0xff] %v2020
                %v2022 = vld [vmem:[%s2016 + $0x10] sm:$0xff]
                %2023 = vst [vmem:[%s2017 + $0x20] sm:$0xff] %v2022
                %v2024 = vld [vmem:[%s2016 + $0x18] sm:$0xff]
                %2025 = vst [vmem:[%s2017 + $0x28] sm:$0xff] %v2024
              $region144: #{dmpnn_forward.1} parent=138 // loop_footer
                %s2015 = sadd.s32 1, %s2011
              $region145: #{dmpnn_forward.1} parent=138 // loop_footer_branch
                %2010 = sbr.rel target = $region141
              $region146: #{dmpnn_forward.1} parent=138 // loop_exit
                _
            $region139: #{dmpnn_forward.1} parent=134 // pred_fallthru
              _
            // Predicated region
            $region147: #{dmpnn_forward.1} parent=134 // pred_check
              _
            $region148: #{dmpnn_forward.1} parent=134 // pred_check_branch
              %2027 = sbr.rel target = $region150
            $region149: #{dmpnn_forward.1} parent=134 // pred_region
              _
            $region150: #{dmpnn_forward.1} parent=134 // pred_fallthru
              _
          $region135: #{dmpnn_forward.1} parent=130 // pred_fallthru
            _
          %2028 = vnop
        $region131: #{dmpnn_forward.1} parent=114 // pred_fallthru
          _
      $region115: #{dmpnn_forward.1} parent=5 // pred_fallthru
        _
      %p2029 = scmp.le.s32.totalorder 2, %s30
      // Predicated region
      $region151: #{dmpnn_forward.1} parent=5 // pred_check
        %p2030 = pneg %p2029
      $region152: #{dmpnn_forward.1} parent=5 // pred_check_branch
        %2032 = sbr.rel (%p2030) target = $region154
      $region153: #{dmpnn_forward.1} parent=5 // pred_region
        %s2033 = ssub.s32 %s30, 2
        // Predicated region
        $region155: #{dmpnn_forward.1} parent=153 // pred_check
          %p2034 = pneg %p493
        $region156: #{dmpnn_forward.1} parent=153 // pred_check_branch
          %2036 = sbr.rel (%p2034) target = $region158
        $region157: #{dmpnn_forward.1} parent=153 // pred_region
          %p2037 = scmp.lt.s32.totalorder %s36, 1
          %s2038 = scalar_select %p2037, %s36, 1
          %s2039 = smul.addr %s2038, 8
          %s2040 = scalar_lea.vmem %s19, %s2039
        $region158: #{dmpnn_forward.1} parent=153 // pred_fallthru
          _
        // Predicated region
        $region159: #{dmpnn_forward.1} parent=153 // pred_check
          %p2041 = pneg %p519
        $region160: #{dmpnn_forward.1} parent=153 // pred_check_branch
          %2043 = sbr.rel (%p2041) target = $region162
        $region161: #{dmpnn_forward.1} parent=153 // pred_region
          %p2044 = scmp.lt.s32.totalorder %s36, 1
          %s2045 = scalar_select %p2044, %s36, 1
          %s2046 = smul.addr %s2045, 2
          %s2047 = scalar_lea.vmem %s20, %s2046
        $region162: #{dmpnn_forward.1} parent=153 // pred_fallthru
          _
        // Predicated region
        $region163: #{dmpnn_forward.1} parent=153 // pred_check
          %p2048 = pneg %p545
        $region164: #{dmpnn_forward.1} parent=153 // pred_check_branch
          %2050 = sbr.rel (%p2048) target = $region166
        $region165: #{dmpnn_forward.1} parent=153 // pred_region
          %s2051 = sand.u32 %s530, 1
          %s2052 = sand.u32 %s530, 1
          %s2053 = smul.addr %s2052, 32
          %s2054 = scalar_lea.vmem [#allocation4], %s2053
        $region166: #{dmpnn_forward.1} parent=153 // pred_fallthru
          _
      $region154: #{dmpnn_forward.1} parent=5 // pred_fallthru
        _
    $region6: #{dmpnn_forward.1} parent=1 // loop_footer
      %s34 = sadd.s32 1, %s30
    $region7: #{dmpnn_forward.1} parent=1 // loop_footer_branch
      %29 = sbr.rel target = $region3
    $region8: #{dmpnn_forward.1} parent=1 // loop_exit
      _

</llo_original>
